<compile_context>
chip_gen: v7x
topology: tpu7x:2x2x1
jax: 0.10.0
libtpu: 0.0.40
codegen_flags: <defaults>
</compile_context>

<pallas_src>
import functools
import numpy as np
import jax
import jax.numpy as jnp
from jax.experimental import pallas as pl
from jax.experimental.pallas import tpu as pltpu

NUM_KERNELS = (8, 8, 8, 4)
NUM_PLANES = (16, 64, 128)
NUM_STRIDES = (4, 6, 4, 2)
Z_DIM = 64
BN_EPS = 1e-5
LRELU_SLOPE = 0.2


def _round_up8(x):
    return ((x + 7) // 8) * 8


def _conv_out_len(L, K, S):
    return (L - K) // S + 1


# ----------------------------- in-kernel helpers ----------------------------- #

def _bn_lrelu(y, gamma, beta):
    """Training-mode BatchNorm1d (biased var, one-pass stats) + LeakyReLU(0.2)."""
    inv_n = 1.0 / y.shape[0]
    s = jnp.sum(y, axis=0, keepdims=True)
    s2 = jnp.sum(y * y, axis=0, keepdims=True)
    mean = s * inv_n
    var = jnp.maximum(s2 * inv_n - mean * mean, 0.0)
    z = (y - mean) * jax.lax.rsqrt(var + BN_EPS) * gamma + beta
    return jnp.where(z >= 0.0, z, LRELU_SLOPE * z)


def _conv_2gemm(x_bf16, s_stack_bf16, w_flat_bf16, patch_ref, K):
    """Conv1d (channels-last, rows = N*L) as exactly two MXU issues.

    1) P = S_stack @ X         -- stacked 0/1 row selection, k-major row blocks
    2) repack row block k of P into lane block k of `patch_ref` (VMEM scratch)
    3) Y = patches @ W_flat    -- one full-depth, lane-dense GEMM
    Returns (R_pad, C_out) f32; caller slices the valid rows.
    """
    r_pad, kc = patch_ref.shape
    c_in = kc // K
    p = jnp.dot(s_stack_bf16, x_bf16,
                preferred_element_type=jnp.float32).astype(jnp.bfloat16)
    for k in range(K):                       # static unroll: K small aligned stores
        patch_ref[:, k * c_in:(k + 1) * c_in] = p[k * r_pad:(k + 1) * r_pad, :]
    return jnp.dot(patch_ref[...], w_flat_bf16, preferred_element_type=jnp.float32)


def encoder_fused_kernel(p0_ref, slab_ref, s1_ref, w1_ref,      # VMEM inputs
                         sel23_hbm, w23_hbm,                    # pl.ANY (HBM) inputs
                         mu_ref, sigma_ref,                     # outputs
                         sel23_vmem, w23_vmem,                  # DMA landing scratch
                         patch1_ref, patch2_ref, patch3_ref,    # im2col scratch
                         dma_sems,                              # DMA semaphores (2,)
                         *, dims):
    N, L1, L2, L3, L4 = dims
    K0, K1, K2, K3 = NUM_KERNELS
    C1, C2, C3 = NUM_PLANES
    CZ = 2 * Z_DIM
    R1, R2, R3 = N * L2, N * L3, N * L4      # true (unpadded) output-row counts
    Rp2, Rp3 = patch2_ref.shape[0], patch3_ref.shape[0]

    # Kick off the layer-2/3 operand DMAs; they complete under layer-0/1 compute.
    cp_sel = pltpu.make_async_copy(sel23_hbm, sel23_vmem, dma_sems.at[0])
    cp_w = pltpu.make_async_copy(w23_hbm, w23_vmem, dma_sems.at[1])
    cp_sel.start()
    cp_w.start()

    # Single param slab (one DMA): rows 0:8 layer-0 weight, rows 8:15 BN params/bias.
    w0 = slab_ref[0:K0, 0:C1].astype(jnp.bfloat16)
    g0, be0 = slab_ref[8:9, 0:C1], slab_ref[9:10, 0:C1]
    g1, be1 = slab_ref[10:11, 0:C2], slab_ref[11:12, 0:C2]
    g2, be2 = slab_ref[12:13, 0:C3], slab_ref[13:14, 0:C3]
    b3 = slab_ref[14:15, 0:CZ]

    # Layer 0: C_in = 1, im2col precomputed -> one GEMM (conv bias cancelled by BN).
    y0 = jnp.dot(p0_ref[...], w0, preferred_element_type=jnp.float32)   # (N*L1, 16)
    x1 = _bn_lrelu(y0, g0, be0).astype(jnp.bfloat16)

    # Layer 1: 2-GEMM conv + BN + LeakyReLU.
    y1 = _conv_2gemm(x1, s1_ref[...], w1_ref[...], patch1_ref, K1)[:R1]  # (N*L2, 64)
    x2 = _bn_lrelu(y1, g1, be1).astype(jnp.bfloat16)

    # Layer-2/3 operands must be resident from here on.
    cp_sel.wait()
    cp_w.wait()

    # Layer 2
    s2 = sel23_vmem[0:K2 * Rp2, :]
    w2 = w23_vmem[0:K2 * C2, 0:C3]
    y2 = _conv_2gemm(x2, s2, w2, patch2_ref, K2)[:R2]                   # (N*L3, 128)
    x3 = _bn_lrelu(y2, g2, be2).astype(jnp.bfloat16)

    # Layer 3: plain conv (bias, no BN / activation).
    s3 = sel23_vmem[K2 * Rp2:K2 * Rp2 + K3 * Rp3, 0:R2]
    w3 = w23_vmem[K2 * C2:K2 * C2 + K3 * C3, 0:CZ]
    y3 = _conv_2gemm(x3, s3, w3, patch3_ref, K3)[:R3] + b3              # (N*L4, 128)

    # Fused tail (valid for L4 == 1, asserted at prepare time): mu, sigma = exp(.)
    mu_ref[...] = y3[:, :Z_DIM]
    sigma_ref[...] = jnp.exp(y3[:, Z_DIM:])


# ------------------------------- host-side glue ------------------------------ #

def _sel_stack(N, L_in, L_out, K, S):
    """(K*R_pad, N*L_in) 0/1 stacked row-selection matrix, k-major row blocks.

    Block k, row n*L_out + l selects input row n*L_in + l*S + k.  Rows beyond
    N*L_out in each block are zero padding (keeps everything sublane-aligned).
    """
    R_pad = _round_up8(N * L_out)
    sel = np.zeros((K * R_pad, N * L_in), np.float32)
    for k in range(K):
        for n in range(N):
            for l in range(L_out):
                sel[k * R_pad + n * L_out + l, n * L_in + l * S + k] = 1.0
    return sel


def _patches_1d(s, K, S):
    """(N, L) single-channel signal -> (N, L_out, K) im2col via slices/reshapes."""
    N, L = s.shape
    L_out = (L - K) // S + 1
    n_q = -(-K // S)                          # ceil(K / S)
    pad = max(0, S * (n_q - 1) + S * L_out - L)
    sp = jnp.pad(s, ((0, 0), (0, pad))) if pad else s
    parts = []
    for q in range(n_q):
        width = min(S, K - S * q)
        blk = sp[:, S * q:S * q + S * L_out].reshape(N, L_out, S)[:, :, :width]
        parts.append(blk)
    return jnp.concatenate(parts, axis=-1), L_out


def init_params(key, im_chan=1, z_dim=Z_DIM):
    chans = [im_chan, NUM_PLANES[0], NUM_PLANES[1], NUM_PLANES[2], z_dim * 2]
    params = []
    for i in range(4):
        key, kw, kb, kg, kbt = jax.random.split(key, 5)
        c_in, c_out, K = chans[i], chans[i + 1], NUM_KERNELS[i]
        w = 0.1 * jax.random.normal(kw, (c_out, c_in, K), jnp.float32)
        b = 0.05 * jax.random.normal(kb, (c_out,), jnp.float32)
        if i < 3:
            gamma = 1.0 + 0.1 * jax.random.normal(kg, (c_out,), jnp.float32)
            beta = 0.05 * jax.random.normal(kbt, (c_out,), jnp.float32)
        else:
            gamma = beta = None
        params.append(dict(w=w, b=b, gamma=gamma, beta=beta))
    return params


def prepare_packed(params, N, L):
    """One-time packing of weights / BN params / selection matrices into the
    device arrays consumed by the fused kernel (outside the per-call hot path)."""
    K0, K1, K2, K3 = NUM_KERNELS
    S0, S1, S2, S3 = NUM_STRIDES
    C1, C2, C3 = NUM_PLANES
    CZ = 2 * Z_DIM
    L1 = _conv_out_len(L, K0, S0)
    L2 = _conv_out_len(L1, K1, S1)
    L3 = _conv_out_len(L2, K2, S2)
    L4 = _conv_out_len(L3, K3, S3)
    assert L4 == 1, "fused mu/sigma tail assumes final conv output length 1"
    # TODO(synk): for L4 > 1 torch's .view(N,-1) channel-major split needs a
    # transpose tail; not required for the reference input length.

    # (16,128) f32 slab: rows 0:8 = layer-0 weight (K0, C1); rows 8:15 params.
    slab = np.zeros((16, 128), np.float32)
    slab[0:K0, 0:C1] = np.asarray(params[0]["w"])[:, 0, :].T
    slab[8, 0:C1] = np.asarray(params[0]["gamma"])
    slab[9, 0:C1] = np.asarray(params[0]["beta"])
    slab[10, 0:C2] = np.asarray(params[1]["gamma"])
    slab[11, 0:C2] = np.asarray(params[1]["beta"])
    slab[12, 0:C3] = np.asarray(params[2]["gamma"])
    slab[13, 0:C3] = np.asarray(params[2]["beta"])
    slab[14, 0:CZ] = np.asarray(params[3]["b"])
    # Conv biases of layers 0-2 are intentionally dropped: training-mode BN's
    # batch-mean subtraction cancels them exactly.

    def w_flat(i, c_in, c_out):
        w = np.asarray(params[i]["w"])                         # (c_out, c_in, K)
        return np.transpose(w, (2, 1, 0)).reshape(NUM_KERNELS[i] * c_in, c_out)

    w1f = w_flat(1, C1, C2)                                    # (K1*C1, C2)
    w2f = w_flat(2, C2, C3)                                    # (K2*C2, C3)
    w3f = w_flat(3, C3, CZ)                                    # (K3*C3, CZ)

    s1 = _sel_stack(N, L1, L2, K1, S1)                         # (K1*Rp1, N*L1)
    s2 = _sel_stack(N, L2, L3, K2, S2)                         # (K2*Rp2, N*L2)
    s3 = _sel_stack(N, L3, L4, K3, S3)                         # (K3*Rp3, N*L3)

    # Merge the layer-2/3 selections / weights into two slabs (fewer DMAs).
    sel23 = np.zeros((s2.shape[0] + s3.shape[0], N * L2), np.float32)
    sel23[:s2.shape[0], :] = s2
    sel23[s2.shape[0]:, :s3.shape[1]] = s3

    wmax = max(w2f.shape[1], w3f.shape[1])
    w23 = np.zeros((w2f.shape[0] + w3f.shape[0], wmax), np.float32)
    w23[:w2f.shape[0], :w2f.shape[1]] = w2f
    w23[w2f.shape[0]:, :w3f.shape[1]] = w3f

    bf = jnp.bfloat16
    return dict(
        slab=jnp.asarray(slab, jnp.float32),
        s1=jnp.asarray(s1, bf),
        w1f=jnp.asarray(w1f, bf),
        sel23=jnp.asarray(sel23, bf),
        w23=jnp.asarray(w23, bf),
    )


@jax.jit
def encoder_x_forward(packed, signal):
    """EncoderX forward: returns (mu, sigma) with sigma = exp(second half)."""
    N, _, L = signal.shape
    K0, K1, K2, K3 = NUM_KERNELS
    S0, S1, S2, S3 = NUM_STRIDES
    C1, C2, C3 = NUM_PLANES
    CZ = 2 * Z_DIM
    L1 = _conv_out_len(L, K0, S0)
    L2 = _conv_out_len(L1, K1, S1)
    L3 = _conv_out_len(L2, K2, S2)
    L4 = _conv_out_len(L3, K3, S3)
    Rp1, Rp2, Rp3 = _round_up8(N * L2), _round_up8(N * L3), _round_up8(N * L4)

    # Layer-0 im2col (C_in = 1) with slices/reshapes only (per-call data).
    p0, _ = _patches_1d(signal[:, 0, :], K0, S0)
    p0 = p0.reshape(N * L1, K0).astype(jnp.bfloat16)

    in_specs = [pl.BlockSpec(memory_space=pltpu.MemorySpace.VMEM) for _ in range(4)]
    in_specs += [pl.BlockSpec(memory_space=pl.ANY) for _ in range(2)]
    out_specs = (pl.BlockSpec(memory_space=pltpu.MemorySpace.VMEM),
                 pl.BlockSpec(memory_space=pltpu.MemorySpace.VMEM))

    mu, sigma = pl.pallas_call(
        functools.partial(encoder_fused_kernel, dims=(N, L1, L2, L3, L4)),
        out_shape=(jax.ShapeDtypeStruct((N * L4, Z_DIM), jnp.float32),
                   jax.ShapeDtypeStruct((N * L4, Z_DIM), jnp.float32)),
        in_specs=in_specs,
        out_specs=out_specs,
        scratch_shapes=[
            pltpu.VMEM((K2 * Rp2 + K3 * Rp3, N * L2), jnp.bfloat16),  # sel23 landing
            pltpu.VMEM((K2 * C2 + K3 * C3, max(C3, CZ)), jnp.bfloat16),  # w2|w3
            pltpu.VMEM((Rp1, K1 * C1), jnp.bfloat16),                 # patch1
            pltpu.VMEM((Rp2, K2 * C2), jnp.bfloat16),                 # patch2
            pltpu.VMEM((Rp3, K3 * C3), jnp.bfloat16),                 # patch3
            pltpu.SemaphoreType.DMA((2,)),
        ],
    )(p0, packed["slab"], packed["s1"], packed["w1f"],
      packed["sel23"], packed["w23"])
    return mu, sigma


if __name__ == "__main__":
    key = jax.random.PRNGKey(0)
    kp, kx = jax.random.split(key)
    params = init_params(kp)
    N, L = 2, 492          # conv output lengths: 492 -> 122 -> 20 -> 4 -> 1
    packed = prepare_packed(params, N, L)
    signal = jax.random.normal(kx, (N, 1, L), jnp.float32)
    mu, sigma = encoder_x_forward(packed, signal)
    jax.block_until_ready((mu, sigma))
    assert mu.shape == (N, Z_DIM) and sigma.shape == (N, Z_DIM)
    assert bool(jnp.all(sigma > 0))
    assert bool(jnp.all(jnp.isfinite(mu))) and bool(jnp.all(jnp.isfinite(sigma)))
    print("KERNEL_OK")
</pallas_src>

<mosaic_0001>
module attributes {stable_mosaic.version = 11 : i64} {
  func.func @encoder_fused_kernel(%arg0: memref<244x8xbf16, #tpu.memory_space<vmem>>, %arg1: memref<16x128xf32, #tpu.memory_space<vmem>>, %arg2: memref<320x244xbf16, #tpu.memory_space<vmem>>, %arg3: memref<128x64xbf16, #tpu.memory_space<vmem>>, %arg4: memref<96x40xbf16, #tpu.memory_space<any>>, %arg5: memref<1024x128xbf16, #tpu.memory_space<any>>, %arg6: memref<2x64xf32, #tpu.memory_space<vmem>>, %arg7: memref<2x64xf32, #tpu.memory_space<vmem>>, %arg8: memref<96x40xbf16, #tpu.memory_space<vmem>>, %arg9: memref<1024x128xbf16, #tpu.memory_space<vmem>>, %arg10: memref<40x128xbf16, #tpu.memory_space<vmem>>, %arg11: memref<8x512xbf16, #tpu.memory_space<vmem>>, %arg12: memref<8x512xbf16, #tpu.memory_space<vmem>>, %arg13: memref<2x!tpu.dma_semaphore, #tpu.memory_space<semaphore_mem>>) attributes {dimension_semantics = [], scalar_prefetch = 0 : i64, scratch_operands = 6 : i64, tpu.core_type = #tpu.core_type<tc>} {
    %c0_i32 = arith.constant 0 : i32
    %0 = tpu.memref_slice %arg13[%c0_i32] : memref<2x!tpu.dma_semaphore, #tpu.memory_space<semaphore_mem>> -> memref<1x!tpu.dma_semaphore, #tpu.memory_space<semaphore_mem>>
    %1 = tpu.memref_squeeze %0 : memref<1x!tpu.dma_semaphore, #tpu.memory_space<semaphore_mem>> -> memref<!tpu.dma_semaphore, #tpu.memory_space<semaphore_mem>>
    tpu.enqueue_dma source(%arg4 : memref<96x40xbf16, #tpu.memory_space<any>>) target(%arg8 : memref<96x40xbf16, #tpu.memory_space<vmem>>) target_semaphore(%1 : memref<!tpu.dma_semaphore, #tpu.memory_space<semaphore_mem>>)
    %c1_i32 = arith.constant 1 : i32
    %2 = tpu.memref_slice %arg13[%c1_i32] : memref<2x!tpu.dma_semaphore, #tpu.memory_space<semaphore_mem>> -> memref<1x!tpu.dma_semaphore, #tpu.memory_space<semaphore_mem>>
    %3 = tpu.memref_squeeze %2 : memref<1x!tpu.dma_semaphore, #tpu.memory_space<semaphore_mem>> -> memref<!tpu.dma_semaphore, #tpu.memory_space<semaphore_mem>>
    tpu.enqueue_dma source(%arg5 : memref<1024x128xbf16, #tpu.memory_space<any>>) target(%arg9 : memref<1024x128xbf16, #tpu.memory_space<vmem>>) target_semaphore(%3 : memref<!tpu.dma_semaphore, #tpu.memory_space<semaphore_mem>>)
    %c0 = arith.constant 0 : index
    %c0_0 = arith.constant 0 : index
    %4 = vector.load %arg1[%c0, %c0_0] : memref<16x128xf32, #tpu.memory_space<vmem>>, vector<8x16xf32>
    %5 = arith.truncf %4 : vector<8x16xf32> to vector<8x16xbf16>
    %c8 = arith.constant 8 : index
    %c0_1 = arith.constant 0 : index
    %6 = vector.load %arg1[%c8, %c0_1] : memref<16x128xf32, #tpu.memory_space<vmem>>, vector<1x16xf32>
    %c9 = arith.constant 9 : index
    %c0_2 = arith.constant 0 : index
    %7 = vector.load %arg1[%c9, %c0_2] : memref<16x128xf32, #tpu.memory_space<vmem>>, vector<1x16xf32>
    %c10 = arith.constant 10 : index
    %c0_3 = arith.constant 0 : index
    %8 = vector.load %arg1[%c10, %c0_3] : memref<16x128xf32, #tpu.memory_space<vmem>>, vector<1x64xf32>
    %c11 = arith.constant 11 : index
    %c0_4 = arith.constant 0 : index
    %9 = vector.load %arg1[%c11, %c0_4] : memref<16x128xf32, #tpu.memory_space<vmem>>, vector<1x64xf32>
    %c12 = arith.constant 12 : index
    %c0_5 = arith.constant 0 : index
    %10 = vector.load %arg1[%c12, %c0_5] : memref<16x128xf32, #tpu.memory_space<vmem>>, vector<1x128xf32>
    %c13 = arith.constant 13 : index
    %c0_6 = arith.constant 0 : index
    %11 = vector.load %arg1[%c13, %c0_6] : memref<16x128xf32, #tpu.memory_space<vmem>>, vector<1x128xf32>
    %c14 = arith.constant 14 : index
    %c0_7 = arith.constant 0 : index
    %12 = vector.load %arg1[%c14, %c0_7] : memref<16x128xf32, #tpu.memory_space<vmem>>, vector<1x128xf32>
    %c0_8 = arith.constant 0 : index
    %c0_9 = arith.constant 0 : index
    %13 = vector.load %arg0[%c0_8, %c0_9] : memref<244x8xbf16, #tpu.memory_space<vmem>>, vector<244x8xbf16>
    %cst = arith.constant dense<0.000000e+00> : vector<244x16xf32>
    %14 = tpu.matmul %13, %5, %cst {dimension_numbers = #tpu.dot_dimension_numbers<[1], [0], [0], [1], [0, 0, 1, 1], [], []>} : vector<244x8xbf16>, vector<8x16xbf16>, vector<244x16xf32> -> vector<244x16xf32>
    %cst_10 = arith.constant dense<0.000000e+00> : vector<16xf32>
    %15 = vector.multi_reduction <add>, %14, %cst_10 [0] : vector<244x16xf32> to vector<16xf32>
    %16 = vector.shape_cast %15 : vector<16xf32> to vector<1x16xf32>
    %17 = arith.mulf %14, %14 : vector<244x16xf32>
    %cst_11 = arith.constant dense<0.000000e+00> : vector<16xf32>
    %18 = vector.multi_reduction <add>, %17, %cst_11 [0] : vector<244x16xf32> to vector<16xf32>
    %19 = vector.shape_cast %18 : vector<16xf32> to vector<1x16xf32>
    %cst_12 = arith.constant 0.00409836043 : f32
    %20 = vector.broadcast %cst_12 : f32 to vector<1x16xf32>
    %21 = arith.mulf %16, %20 : vector<1x16xf32>
    %cst_13 = arith.constant 0.00409836043 : f32
    %22 = vector.broadcast %cst_13 : f32 to vector<1x16xf32>
    %23 = arith.mulf %19, %22 : vector<1x16xf32>
    %24 = arith.mulf %21, %21 : vector<1x16xf32>
    %25 = arith.subf %23, %24 : vector<1x16xf32>
    %cst_14 = arith.constant 0.000000e+00 : f32
    %26 = vector.broadcast %cst_14 : f32 to vector<1x16xf32>
    %27 = arith.maximumf %25, %26 : vector<1x16xf32>
    %28 = vector.broadcast %21 : vector<1x16xf32> to vector<244x16xf32>
    %29 = arith.subf %14, %28 : vector<244x16xf32>
    %cst_15 = arith.constant 9.99999974E-6 : f32
    %30 = vector.broadcast %cst_15 : f32 to vector<1x16xf32>
    %31 = arith.addf %27, %30 : vector<1x16xf32>
    %32 = math.rsqrt %31 : vector<1x16xf32>
    %33 = vector.broadcast %32 : vector<1x16xf32> to vector<244x16xf32>
    %34 = arith.mulf %29, %33 : vector<244x16xf32>
    %35 = vector.broadcast %6 : vector<1x16xf32> to vector<244x16xf32>
    %36 = arith.mulf %34, %35 : vector<244x16xf32>
    %37 = vector.broadcast %7 : vector<1x16xf32> to vector<244x16xf32>
    %38 = arith.addf %36, %37 : vector<244x16xf32>
    %cst_16 = arith.constant 0.000000e+00 : f32
    %39 = vector.broadcast %cst_16 : f32 to vector<244x16xf32>
    %40 = arith.cmpf oge, %38, %39 : vector<244x16xf32>
    %cst_17 = arith.constant 2.000000e-01 : f32
    %41 = vector.broadcast %cst_17 : f32 to vector<244x16xf32>
    %42 = arith.mulf %41, %38 : vector<244x16xf32>
    %43 = arith.select %40, %38, %42 : vector<244x16xi1>, vector<244x16xf32>
    %44 = arith.truncf %43 : vector<244x16xf32> to vector<244x16xbf16>
    %c0_18 = arith.constant 0 : index
    %c0_19 = arith.constant 0 : index
    %45 = vector.load %arg2[%c0_18, %c0_19] : memref<320x244xbf16, #tpu.memory_space<vmem>>, vector<320x244xbf16>
    %c0_20 = arith.constant 0 : index
    %c0_21 = arith.constant 0 : index
    %46 = vector.load %arg3[%c0_20, %c0_21] : memref<128x64xbf16, #tpu.memory_space<vmem>>, vector<128x64xbf16>
    %cst_22 = arith.constant dense<0.000000e+00> : vector<320x16xf32>
    %47 = tpu.matmul %45, %44, %cst_22 {dimension_numbers = #tpu.dot_dimension_numbers<[1], [0], [0], [1], [0, 0, 1, 1], [], []>} : vector<320x244xbf16>, vector<244x16xbf16>, vector<320x16xf32> -> vector<320x16xf32>
    %48 = arith.truncf %47 : vector<320x16xf32> to vector<320x16xbf16>
    %49 = vector.extract_strided_slice %48 {offsets = [0, 0], sizes = [40, 16], strides = [1, 1]} : vector<320x16xbf16> to vector<40x16xbf16>
    %c0_23 = arith.constant 0 : index
    %c0_24 = arith.constant 0 : index
    %50 = vector.load %arg10[%c0_23, %c0_24] : memref<40x128xbf16, #tpu.memory_space<vmem>>, vector<40x16xbf16>
    tpu.vector_store %arg10[%c0_23, %c0_24], %49 {strides = array<i32>} : memref<40x128xbf16, #tpu.memory_space<vmem>>, vector<40x16xbf16>,
    %51 = vector.extract_strided_slice %48 {offsets = [40, 0], sizes = [40, 16], strides = [1, 1]} : vector<320x16xbf16> to vector<40x16xbf16>
    %c0_25 = arith.constant 0 : index
    %c16 = arith.constant 16 : index
    %52 = vector.load %arg10[%c0_25, %c16] : memref<40x128xbf16, #tpu.memory_space<vmem>>, vector<40x16xbf16>
    tpu.vector_store %arg10[%c0_25, %c16], %51 {strides = array<i32>} : memref<40x128xbf16, #tpu.memory_space<vmem>>, vector<40x16xbf16>,
    %53 = vector.extract_strided_slice %48 {offsets = [80, 0], sizes = [40, 16], strides = [1, 1]} : vector<320x16xbf16> to vector<40x16xbf16>
    %c0_26 = arith.constant 0 : index
    %c32 = arith.constant 32 : index
    %54 = vector.load %arg10[%c0_26, %c32] : memref<40x128xbf16, #tpu.memory_space<vmem>>, vector<40x16xbf16>
    tpu.vector_store %arg10[%c0_26, %c32], %53 {strides = array<i32>} : memref<40x128xbf16, #tpu.memory_space<vmem>>, vector<40x16xbf16>,
    %55 = vector.extract_strided_slice %48 {offsets = [120, 0], sizes = [40, 16], strides = [1, 1]} : vector<320x16xbf16> to vector<40x16xbf16>
    %c0_27 = arith.constant 0 : index
    %c48 = arith.constant 48 : index
    %56 = vector.load %arg10[%c0_27, %c48] : memref<40x128xbf16, #tpu.memory_space<vmem>>, vector<40x16xbf16>
    tpu.vector_store %arg10[%c0_27, %c48], %55 {strides = array<i32>} : memref<40x128xbf16, #tpu.memory_space<vmem>>, vector<40x16xbf16>,
    %57 = vector.extract_strided_slice %48 {offsets = [160, 0], sizes = [40, 16], strides = [1, 1]} : vector<320x16xbf16> to vector<40x16xbf16>
    %c0_28 = arith.constant 0 : index
    %c64 = arith.constant 64 : index
    %58 = vector.load %arg10[%c0_28, %c64] : memref<40x128xbf16, #tpu.memory_space<vmem>>, vector<40x16xbf16>
    tpu.vector_store %arg10[%c0_28, %c64], %57 {strides = array<i32>} : memref<40x128xbf16, #tpu.memory_space<vmem>>, vector<40x16xbf16>,
    %59 = vector.extract_strided_slice %48 {offsets = [200, 0], sizes = [40, 16], strides = [1, 1]} : vector<320x16xbf16> to vector<40x16xbf16>
    %c0_29 = arith.constant 0 : index
    %c80 = arith.constant 80 : index
    %60 = vector.load %arg10[%c0_29, %c80] : memref<40x128xbf16, #tpu.memory_space<vmem>>, vector<40x16xbf16>
    tpu.vector_store %arg10[%c0_29, %c80], %59 {strides = array<i32>} : memref<40x128xbf16, #tpu.memory_space<vmem>>, vector<40x16xbf16>,
    %61 = vector.extract_strided_slice %48 {offsets = [240, 0], sizes = [40, 16], strides = [1, 1]} : vector<320x16xbf16> to vector<40x16xbf16>
    %c0_30 = arith.constant 0 : index
    %c96 = arith.constant 96 : index
    %62 = vector.load %arg10[%c0_30, %c96] : memref<40x128xbf16, #tpu.memory_space<vmem>>, vector<40x16xbf16>
    tpu.vector_store %arg10[%c0_30, %c96], %61 {strides = array<i32>} : memref<40x128xbf16, #tpu.memory_space<vmem>>, vector<40x16xbf16>,
    %63 = vector.extract_strided_slice %48 {offsets = [280, 0], sizes = [40, 16], strides = [1, 1]} : vector<320x16xbf16> to vector<40x16xbf16>
    %c0_31 = arith.constant 0 : index
    %c112 = arith.constant 112 : index
    %64 = vector.load %arg10[%c0_31, %c112] : memref<40x128xbf16, #tpu.memory_space<vmem>>, vector<40x16xbf16>
    tpu.vector_store %arg10[%c0_31, %c112], %63 {strides = array<i32>} : memref<40x128xbf16, #tpu.memory_space<vmem>>, vector<40x16xbf16>,
    %c0_32 = arith.constant 0 : index
    %c0_33 = arith.constant 0 : index
    %65 = vector.load %arg10[%c0_32, %c0_33] : memref<40x128xbf16, #tpu.memory_space<vmem>>, vector<40x128xbf16>
    %cst_34 = arith.constant dense<0.000000e+00> : vector<40x64xf32>
    %66 = tpu.matmul %65, %46, %cst_34 {dimension_numbers = #tpu.dot_dimension_numbers<[1], [0], [0], [1], [0, 0, 1, 1], [], []>} : vector<40x128xbf16>, vector<128x64xbf16>, vector<40x64xf32> -> vector<40x64xf32>
    %cst_35 = arith.constant dense<0.000000e+00> : vector<64xf32>
    %67 = vector.multi_reduction <add>, %66, %cst_35 [0] : vector<40x64xf32> to vector<64xf32>
    %68 = vector.shape_cast %67 : vector<64xf32> to vector<1x64xf32>
    %69 = arith.mulf %66, %66 : vector<40x64xf32>
    %cst_36 = arith.constant dense<0.000000e+00> : vector<64xf32>
    %70 = vector.multi_reduction <add>, %69, %cst_36 [0] : vector<40x64xf32> to vector<64xf32>
    %71 = vector.shape_cast %70 : vector<64xf32> to vector<1x64xf32>
    %cst_37 = arith.constant 2.500000e-02 : f32
    %72 = vector.broadcast %cst_37 : f32 to vector<1x64xf32>
    %73 = arith.mulf %68, %72 : vector<1x64xf32>
    %cst_38 = arith.constant 2.500000e-02 : f32
    %74 = vector.broadcast %cst_38 : f32 to vector<1x64xf32>
    %75 = arith.mulf %71, %74 : vector<1x64xf32>
    %76 = arith.mulf %73, %73 : vector<1x64xf32>
    %77 = arith.subf %75, %76 : vector<1x64xf32>
    %cst_39 = arith.constant 0.000000e+00 : f32
    %78 = vector.broadcast %cst_39 : f32 to vector<1x64xf32>
    %79 = arith.maximumf %77, %78 : vector<1x64xf32>
    %80 = vector.broadcast %73 : vector<1x64xf32> to vector<40x64xf32>
    %81 = arith.subf %66, %80 : vector<40x64xf32>
    %cst_40 = arith.constant 9.99999974E-6 : f32
    %82 = vector.broadcast %cst_40 : f32 to vector<1x64xf32>
    %83 = arith.addf %79, %82 : vector<1x64xf32>
    %84 = math.rsqrt %83 : vector<1x64xf32>
    %85 = vector.broadcast %84 : vector<1x64xf32> to vector<40x64xf32>
    %86 = arith.mulf %81, %85 : vector<40x64xf32>
    %87 = vector.broadcast %8 : vector<1x64xf32> to vector<40x64xf32>
    %88 = arith.mulf %86, %87 : vector<40x64xf32>
    %89 = vector.broadcast %9 : vector<1x64xf32> to vector<40x64xf32>
    %90 = arith.addf %88, %89 : vector<40x64xf32>
    %cst_41 = arith.constant 0.000000e+00 : f32
    %91 = vector.broadcast %cst_41 : f32 to vector<40x64xf32>
    %92 = arith.cmpf oge, %90, %91 : vector<40x64xf32>
    %cst_42 = arith.constant 2.000000e-01 : f32
    %93 = vector.broadcast %cst_42 : f32 to vector<40x64xf32>
    %94 = arith.mulf %93, %90 : vector<40x64xf32>
    %95 = arith.select %92, %90, %94 : vector<40x64xi1>, vector<40x64xf32>
    %96 = arith.truncf %95 : vector<40x64xf32> to vector<40x64xbf16>
    %c0_i32_43 = arith.constant 0 : i32
    %97 = tpu.memref_slice %arg13[%c0_i32_43] : memref<2x!tpu.dma_semaphore, #tpu.memory_space<semaphore_mem>> -> memref<1x!tpu.dma_semaphore, #tpu.memory_space<semaphore_mem>>
    %98 = tpu.memref_squeeze %97 : memref<1x!tpu.dma_semaphore, #tpu.memory_space<semaphore_mem>> -> memref<!tpu.dma_semaphore, #tpu.memory_space<semaphore_mem>>
    tpu.wait_dma2 semaphore(%98 : memref<!tpu.dma_semaphore, #tpu.memory_space<semaphore_mem>>) src(%arg4 : memref<96x40xbf16, #tpu.memory_space<any>>) dst(%arg8 : memref<96x40xbf16, #tpu.memory_space<vmem>>)
    %c1_i32_44 = arith.constant 1 : i32
    %99 = tpu.memref_slice %arg13[%c1_i32_44] : memref<2x!tpu.dma_semaphore, #tpu.memory_space<semaphore_mem>> -> memref<1x!tpu.dma_semaphore, #tpu.memory_space<semaphore_mem>>
    %100 = tpu.memref_squeeze %99 : memref<1x!tpu.dma_semaphore, #tpu.memory_space<semaphore_mem>> -> memref<!tpu.dma_semaphore, #tpu.memory_space<semaphore_mem>>
    tpu.wait_dma2 semaphore(%100 : memref<!tpu.dma_semaphore, #tpu.memory_space<semaphore_mem>>) src(%arg5 : memref<1024x128xbf16, #tpu.memory_space<any>>) dst(%arg9 : memref<1024x128xbf16, #tpu.memory_space<vmem>>)
    %c0_45 = arith.constant 0 : index
    %c0_46 = arith.constant 0 : index
    %101 = vector.load %arg8[%c0_45, %c0_46] : memref<96x40xbf16, #tpu.memory_space<vmem>>, vector<64x40xbf16>
    %c0_47 = arith.constant 0 : index
    %c0_48 = arith.constant 0 : index
    %102 = vector.load %arg9[%c0_47, %c0_48] : memref<1024x128xbf16, #tpu.memory_space<vmem>>, vector<512x128xbf16>
    %cst_49 = arith.constant dense<0.000000e+00> : vector<64x64xf32>
    %103 = tpu.matmul %101, %96, %cst_49 {dimension_numbers = #tpu.dot_dimension_numbers<[1], [0], [0], [1], [0, 0, 1, 1], [], []>} : vector<64x40xbf16>, vector<40x64xbf16>, vector<64x64xf32> -> vector<64x64xf32>
    %104 = arith.truncf %103 : vector<64x64xf32> to vector<64x64xbf16>
    %105 = vector.extract_strided_slice %104 {offsets = [0, 0], sizes = [8, 64], strides = [1, 1]} : vector<64x64xbf16> to vector<8x64xbf16>
    %c0_50 = arith.constant 0 : index
    %c0_51 = arith.constant 0 : index
    %106 = vector.load %arg11[%c0_50, %c0_51] : memref<8x512xbf16, #tpu.memory_space<vmem>>, vector<8x64xbf16>
    tpu.vector_store %arg11[%c0_50, %c0_51], %105 {strides = array<i32>} : memref<8x512xbf16, #tpu.memory_space<vmem>>, vector<8x64xbf16>,
    %107 = vector.extract_strided_slice %104 {offsets = [8, 0], sizes = [8, 64], strides = [1, 1]} : vector<64x64xbf16> to vector<8x64xbf16>
    %c0_52 = arith.constant 0 : index
    %c64_53 = arith.constant 64 : index
    %108 = vector.load %arg11[%c0_52, %c64_53] : memref<8x512xbf16, #tpu.memory_space<vmem>>, vector<8x64xbf16>
    tpu.vector_store %arg11[%c0_52, %c64_53], %107 {strides = array<i32>} : memref<8x512xbf16, #tpu.memory_space<vmem>>, vector<8x64xbf16>,
    %109 = vector.extract_strided_slice %104 {offsets = [16, 0], sizes = [8, 64], strides = [1, 1]} : vector<64x64xbf16> to vector<8x64xbf16>
    %c0_54 = arith.constant 0 : index
    %c128 = arith.constant 128 : index
    %110 = vector.load %arg11[%c0_54, %c128] : memref<8x512xbf16, #tpu.memory_space<vmem>>, vector<8x64xbf16>
    tpu.vector_store %arg11[%c0_54, %c128], %109 {strides = array<i32>} : memref<8x512xbf16, #tpu.memory_space<vmem>>, vector<8x64xbf16>,
    %111 = vector.extract_strided_slice %104 {offsets = [24, 0], sizes = [8, 64], strides = [1, 1]} : vector<64x64xbf16> to vector<8x64xbf16>
    %c0_55 = arith.constant 0 : index
    %c192 = arith.constant 192 : index
    %112 = vector.load %arg11[%c0_55, %c192] : memref<8x512xbf16, #tpu.memory_space<vmem>>, vector<8x64xbf16>
    tpu.vector_store %arg11[%c0_55, %c192], %111 {strides = array<i32>} : memref<8x512xbf16, #tpu.memory_space<vmem>>, vector<8x64xbf16>,
    %113 = vector.extract_strided_slice %104 {offsets = [32, 0], sizes = [8, 64], strides = [1, 1]} : vector<64x64xbf16> to vector<8x64xbf16>
    %c0_56 = arith.constant 0 : index
    %c256 = arith.constant 256 : index
    %114 = vector.load %arg11[%c0_56, %c256] : memref<8x512xbf16, #tpu.memory_space<vmem>>, vector<8x64xbf16>
    tpu.vector_store %arg11[%c0_56, %c256], %113 {strides = array<i32>} : memref<8x512xbf16, #tpu.memory_space<vmem>>, vector<8x64xbf16>,
    %115 = vector.extract_strided_slice %104 {offsets = [40, 0], sizes = [8, 64], strides = [1, 1]} : vector<64x64xbf16> to vector<8x64xbf16>
    %c0_57 = arith.constant 0 : index
    %c320 = arith.constant 320 : index
    %116 = vector.load %arg11[%c0_57, %c320] : memref<8x512xbf16, #tpu.memory_space<vmem>>, vector<8x64xbf16>
    tpu.vector_store %arg11[%c0_57, %c320], %115 {strides = array<i32>} : memref<8x512xbf16, #tpu.memory_space<vmem>>, vector<8x64xbf16>,
    %117 = vector.extract_strided_slice %104 {offsets = [48, 0], sizes = [8, 64], strides = [1, 1]} : vector<64x64xbf16> to vector<8x64xbf16>
    %c0_58 = arith.constant 0 : index
    %c384 = arith.constant 384 : index
    %118 = vector.load %arg11[%c0_58, %c384] : memref<8x512xbf16, #tpu.memory_space<vmem>>, vector<8x64xbf16>
    tpu.vector_store %arg11[%c0_58, %c384], %117 {strides = array<i32>} : memref<8x512xbf16, #tpu.memory_space<vmem>>, vector<8x64xbf16>,
    %119 = vector.extract_strided_slice %104 {offsets = [56, 0], sizes = [8, 64], strides = [1, 1]} : vector<64x64xbf16> to vector<8x64xbf16>
    %c0_59 = arith.constant 0 : index
    %c448 = arith.constant 448 : index
    %120 = vector.load %arg11[%c0_59, %c448] : memref<8x512xbf16, #tpu.memory_space<vmem>>, vector<8x64xbf16>
    tpu.vector_store %arg11[%c0_59, %c448], %119 {strides = array<i32>} : memref<8x512xbf16, #tpu.memory_space<vmem>>, vector<8x64xbf16>,
    %c0_60 = arith.constant 0 : index
    %c0_61 = arith.constant 0 : index
    %121 = vector.load %arg11[%c0_60, %c0_61] : memref<8x512xbf16, #tpu.memory_space<vmem>>, vector<8x512xbf16>
    %cst_62 = arith.constant dense<0.000000e+00> : vector<8x128xf32>
    %122 = tpu.matmul %121, %102, %cst_62 {dimension_numbers = #tpu.dot_dimension_numbers<[1], [0], [0], [1], [0, 0, 1, 1], [], []>} : vector<8x512xbf16>, vector<512x128xbf16>, vector<8x128xf32> -> vector<8x128xf32>
    %cst_63 = arith.constant dense<0.000000e+00> : vector<128xf32>
    %123 = vector.multi_reduction <add>, %122, %cst_63 [0] : vector<8x128xf32> to vector<128xf32>
    %124 = vector.shape_cast %123 : vector<128xf32> to vector<1x128xf32>
    %125 = arith.mulf %122, %122 : vector<8x128xf32>
    %cst_64 = arith.constant dense<0.000000e+00> : vector<128xf32>
    %126 = vector.multi_reduction <add>, %125, %cst_64 [0] : vector<8x128xf32> to vector<128xf32>
    %127 = vector.shape_cast %126 : vector<128xf32> to vector<1x128xf32>
    %cst_65 = arith.constant 1.250000e-01 : f32
    %128 = vector.broadcast %cst_65 : f32 to vector<1x128xf32>
    %129 = arith.mulf %124, %128 : vector<1x128xf32>
    %cst_66 = arith.constant 1.250000e-01 : f32
    %130 = vector.broadcast %cst_66 : f32 to vector<1x128xf32>
    %131 = arith.mulf %127, %130 : vector<1x128xf32>
    %132 = arith.mulf %129, %129 : vector<1x128xf32>
    %133 = arith.subf %131, %132 : vector<1x128xf32>
    %cst_67 = arith.constant 0.000000e+00 : f32
    %134 = vector.broadcast %cst_67 : f32 to vector<1x128xf32>
    %135 = arith.maximumf %133, %134 : vector<1x128xf32>
    %136 = vector.broadcast %129 : vector<1x128xf32> to vector<8x128xf32>
    %137 = arith.subf %122, %136 : vector<8x128xf32>
    %cst_68 = arith.constant 9.99999974E-6 : f32
    %138 = vector.broadcast %cst_68 : f32 to vector<1x128xf32>
    %139 = arith.addf %135, %138 : vector<1x128xf32>
    %140 = math.rsqrt %139 : vector<1x128xf32>
    %141 = vector.broadcast %140 : vector<1x128xf32> to vector<8x128xf32>
    %142 = arith.mulf %137, %141 : vector<8x128xf32>
    %143 = vector.broadcast %10 : vector<1x128xf32> to vector<8x128xf32>
    %144 = arith.mulf %142, %143 : vector<8x128xf32>
    %145 = vector.broadcast %11 : vector<1x128xf32> to vector<8x128xf32>
    %146 = arith.addf %144, %145 : vector<8x128xf32>
    %cst_69 = arith.constant 0.000000e+00 : f32
    %147 = vector.broadcast %cst_69 : f32 to vector<8x128xf32>
    %148 = arith.cmpf oge, %146, %147 : vector<8x128xf32>
    %cst_70 = arith.constant 2.000000e-01 : f32
    %149 = vector.broadcast %cst_70 : f32 to vector<8x128xf32>
    %150 = arith.mulf %149, %146 : vector<8x128xf32>
    %151 = arith.select %148, %146, %150 : vector<8x128xi1>, vector<8x128xf32>
    %152 = arith.truncf %151 : vector<8x128xf32> to vector<8x128xbf16>
    %c64_71 = arith.constant 64 : index
    %c0_72 = arith.constant 0 : index
    %153 = vector.load %arg8[%c64_71, %c0_72] : memref<96x40xbf16, #tpu.memory_space<vmem>>, vector<32x8xbf16>
    %c512 = arith.constant 512 : index
    %c0_73 = arith.constant 0 : index
    %154 = vector.load %arg9[%c512, %c0_73] : memref<1024x128xbf16, #tpu.memory_space<vmem>>, vector<512x128xbf16>
    %cst_74 = arith.constant dense<0.000000e+00> : vector<32x128xf32>
    %155 = tpu.matmul %153, %152, %cst_74 {dimension_numbers = #tpu.dot_dimension_numbers<[1], [0], [0], [1], [0, 0, 1, 1], [], []>} : vector<32x8xbf16>, vector<8x128xbf16>, vector<32x128xf32> -> vector<32x128xf32>
    %156 = arith.truncf %155 : vector<32x128xf32> to vector<32x128xbf16>
    %157 = vector.extract_strided_slice %156 {offsets = [0, 0], sizes = [8, 128], strides = [1, 1]} : vector<32x128xbf16> to vector<8x128xbf16>
    %c0_75 = arith.constant 0 : index
    %c0_76 = arith.constant 0 : index
    %158 = vector.load %arg12[%c0_75, %c0_76] : memref<8x512xbf16, #tpu.memory_space<vmem>>, vector<8x128xbf16>
    tpu.vector_store %arg12[%c0_75, %c0_76], %157 {strides = array<i32>} : memref<8x512xbf16, #tpu.memory_space<vmem>>, vector<8x128xbf16>,
    %159 = vector.extract_strided_slice %156 {offsets = [8, 0], sizes = [8, 128], strides = [1, 1]} : vector<32x128xbf16> to vector<8x128xbf16>
    %c0_77 = arith.constant 0 : index
    %c128_78 = arith.constant 128 : index
    %160 = vector.load %arg12[%c0_77, %c128_78] : memref<8x512xbf16, #tpu.memory_space<vmem>>, vector<8x128xbf16>
    tpu.vector_store %arg12[%c0_77, %c128_78], %159 {strides = array<i32>} : memref<8x512xbf16, #tpu.memory_space<vmem>>, vector<8x128xbf16>,
    %161 = vector.extract_strided_slice %156 {offsets = [16, 0], sizes = [8, 128], strides = [1, 1]} : vector<32x128xbf16> to vector<8x128xbf16>
    %c0_79 = arith.constant 0 : index
    %c256_80 = arith.constant 256 : index
    %162 = vector.load %arg12[%c0_79, %c256_80] : memref<8x512xbf16, #tpu.memory_space<vmem>>, vector<8x128xbf16>
    tpu.vector_store %arg12[%c0_79, %c256_80], %161 {strides = array<i32>} : memref<8x512xbf16, #tpu.memory_space<vmem>>, vector<8x128xbf16>,
    %163 = vector.extract_strided_slice %156 {offsets = [24, 0], sizes = [8, 128], strides = [1, 1]} : vector<32x128xbf16> to vector<8x128xbf16>
    %c0_81 = arith.constant 0 : index
    %c384_82 = arith.constant 384 : index
    %164 = vector.load %arg12[%c0_81, %c384_82] : memref<8x512xbf16, #tpu.memory_space<vmem>>, vector<8x128xbf16>
    tpu.vector_store %arg12[%c0_81, %c384_82], %163 {strides = array<i32>} : memref<8x512xbf16, #tpu.memory_space<vmem>>, vector<8x128xbf16>,
    %c0_83 = arith.constant 0 : index
    %c0_84 = arith.constant 0 : index
    %165 = vector.load %arg12[%c0_83, %c0_84] : memref<8x512xbf16, #tpu.memory_space<vmem>>, vector<8x512xbf16>
    %cst_85 = arith.constant dense<0.000000e+00> : vector<8x128xf32>
    %166 = tpu.matmul %165, %154, %cst_85 {dimension_numbers = #tpu.dot_dimension_numbers<[1], [0], [0], [1], [0, 0, 1, 1], [], []>} : vector<8x512xbf16>, vector<512x128xbf16>, vector<8x128xf32> -> vector<8x128xf32>
    %167 = vector.extract_strided_slice %166 {offsets = [0, 0], sizes = [2, 128], strides = [1, 1]} : vector<8x128xf32> to vector<2x128xf32>
    %168 = vector.broadcast %12 : vector<1x128xf32> to vector<2x128xf32>
    %169 = arith.addf %167, %168 : vector<2x128xf32>
    %170 = vector.extract_strided_slice %169 {offsets = [0, 0], sizes = [2, 64], strides = [1, 1]} : vector<2x128xf32> to vector<2x64xf32>
    %c0_86 = arith.constant 0 : index
    %c0_87 = arith.constant 0 : index
    %171 = vector.load %arg6[%c0_86, %c0_87] : memref<2x64xf32, #tpu.memory_space<vmem>>, vector<2x64xf32>
    tpu.vector_store %arg6[%c0_86, %c0_87], %170 {strides = array<i32>} : memref<2x64xf32, #tpu.memory_space<vmem>>, vector<2x64xf32>,
    %172 = vector.extract_strided_slice %169 {offsets = [0, 64], sizes = [2, 64], strides = [1, 1]} : vector<2x128xf32> to vector<2x64xf32>
    %173 = math.exp %172 : vector<2x64xf32>
    %c0_88 = arith.constant 0 : index
    %c0_89 = arith.constant 0 : index
    %174 = vector.load %arg7[%c0_88, %c0_89] : memref<2x64xf32, #tpu.memory_space<vmem>>, vector<2x64xf32>
    tpu.vector_store %arg7[%c0_88, %c0_89], %173 {strides = array<i32>} : memref<2x64xf32, #tpu.memory_space<vmem>>, vector<2x64xf32>,
    return
  }
}

</mosaic_0001>

<llo_original>
// kernel: encoder_x_forward.1
$region0: #{encoder_x_forward.1}
  #allocation0 [shape = 'u32[]', space=smem, size = 0x4, offset = 0x4, fixed_abs, tag = 'smem constant byte address 0x4 - core index']
  #allocation1 [shape = 'u32[144,128]{1,0:T(1,128)}', space=vmem, size = 0x12000, scoped, tag = 'internal scratch']
  #allocation2 [shape = 'bf16[96,40]{1,0:T(16,128)(2,1)}', space=vmem, size = 0x6000, scoped, tag = 'scratch operand']
  #allocation3 [shape = 'bf16[1024,128]{1,0:T(16,128)(2,1)}', space=vmem, size = 0x40000, scoped, tag = 'scratch operand']
  #allocation4 [shape = 'bf16[40,128]{1,0:T(8,128)(2,1)}', space=vmem, size = 0x2800, scoped, tag = 'scratch operand']
  #allocation5 [shape = 'bf16[8,512]{1,0:T(8,128)(2,1)}', space=vmem, size = 0x2000, scoped, tag = 'scratch operand']
  #allocation6 [shape = 'bf16[8,512]{1,0:T(8,128)(2,1)}', space=vmem, size = 0x2000, scoped, tag = 'scratch operand']
  #allocation7 [shape = 's32[2]{0}', space=sflag, size = 0x8, scoped, tag = 'scratch operand']
  #allocation14 [shape = 's32[]', space=sflag, size = 0x4, offset = 0, fixed_abs, tag = 'sflag constant byte address 0x0 - dummy sync flag']
  #allocation15 [shape = 's32[]', space=sflag, size = 0x4, offset = 0, fixed_abs, tag = 'sflag constant byte address 0x0 - dummy sync flag']
  %s0 = inlined_call_operand.vmem [shape: bf16[244,8], index: 0, kind: input, shape index: {}]
  %s1 = inlined_call_operand.hbm [shape: f32[16,128], index: 1, kind: input, shape index: {}]
  %s2 = inlined_call_operand.vmem [shape: bf16[320,244], index: 2, kind: input, shape index: {}]
  %s3 = inlined_call_operand.vmem [shape: bf16[128,64], index: 3, kind: input, shape index: {}]
  %s4 = inlined_call_operand.vmem [shape: bf16[96,40], index: 4, kind: input, shape index: {}]
  %s5 = inlined_call_operand.vmem [shape: bf16[1024,128], index: 5, kind: input, shape index: {}]
  %s6 = inlined_call_operand.hbm [shape: f32[2,64], index: 6, kind: output, shape index: {0}]
  %s7 = inlined_call_operand.hbm [shape: f32[2,64], index: 7, kind: output, shape index: {1}]
  %8 = xla_tuple %s6, %s7
  %s9 = sld [smem:[#allocation0]]
  $region106: #{encoder_x_forward.1} parent=0
    _
  %s11 = ssub.s32 1, %s9
  %s12 = scalar_select 0, %s11, %s9
  $region1: #{encoder_x_forward.1} parent=0
    #allocation8 [shape = 'u8[8192]{0}', space=vmem, size = 0x2000, scoped, tag = 'input window, operand 1, single buffered']
    #allocation9 [shape = 's32[1]{0}', space=sflag, size = 0x4, scoped, tag = 'scoped memory for encoder_x_forward.1']
    #allocation10 [shape = 's32[1]{0}', space=sflag, size = 0x4, scoped, tag = 'scoped memory for encoder_x_forward.1']
    #allocation11 [shape = 'u8[1024]{0}', space=vmem, size = 0x400, scoped, tag = 'output window, operand 0, single buffered']
    #allocation12 [shape = 'u8[1024]{0}', space=vmem, size = 0x400, scoped, tag = 'output window, operand 1, single buffered']
    #allocation13 [shape = 's32[1]{0}', space=sflag, size = 0x4, scoped, tag = 'scoped memory for encoder_x_forward.1']
    %13 = vsyncpa [#allocation9], 0
    %14 = vsyncpa [#allocation10], 0
    %15 = vsyncpa [#allocation13], 0
    // Predicated region
    $region2: #{encoder_x_forward.1} parent=1 // pred_check
      _
    $region3: #{encoder_x_forward.1} parent=1 // pred_check_branch
      %17 = sbr.rel (0) target = $region5
    $region4: #{encoder_x_forward.1} parent=1 // pred_region
      _
    $region5: #{encoder_x_forward.1} parent=1 // pred_fallthru
      _
    // Predicated region
    $region6: #{encoder_x_forward.1} parent=1 // pred_check
      _
    $region7: #{encoder_x_forward.1} parent=1 // pred_check_branch
      %19 = sbr.rel (0) target = $region9
    $region8: #{encoder_x_forward.1} parent=1 // pred_region
      %s21 = ssub.s32 256, 256
      %22 = vsyncadd [#allocation9], %s21
      %s23 = sshll.u32 [#allocation8], 4
      %s24 = int_to_ptr.vmem [resolvable:$true] %s23
      %29 = dma.hbm_to_vmem [thread:$0]  %s1, 256, %s24, [#allocation9], 128, 128, 8
    $region9: #{encoder_x_forward.1} parent=1 // pred_fallthru
      _
    // Predicated region
    $region10: #{encoder_x_forward.1} parent=1 // pred_check
      _
    $region11: #{encoder_x_forward.1} parent=1 // pred_check_branch
      %31 = sbr.rel (0) target = $region13
    $region12: #{encoder_x_forward.1} parent=1 // pred_region
      _
    $region13: #{encoder_x_forward.1} parent=1 // pred_fallthru
      _
    // Predicated region
    $region14: #{encoder_x_forward.1} parent=1 // pred_check
      _
    $region15: #{encoder_x_forward.1} parent=1 // pred_check_branch
      %33 = sbr.rel (0) target = $region17
    $region16: #{encoder_x_forward.1} parent=1 // pred_region
      _
    $region17: #{encoder_x_forward.1} parent=1 // pred_fallthru
      _
    // Predicated region
    $region18: #{encoder_x_forward.1} parent=1 // pred_check
      _
    $region19: #{encoder_x_forward.1} parent=1 // pred_check_branch
      %35 = sbr.rel (0) target = $region21
    $region20: #{encoder_x_forward.1} parent=1 // pred_region
      %36 = dma.done [#allocation9], 256
    $region21: #{encoder_x_forward.1} parent=1 // pred_fallthru
      _
    %p39 = scmp.lt.u32.totalorder 48, 8
    %p40 = pneg %p39
    // Predicated region
    $region22: #{encoder_x_forward.1} parent=1 // pred_check
      _
    $region23: #{encoder_x_forward.1} parent=1 // pred_check_branch
      %42 = sbr.rel (%p39) target = $region25
    $region24: #{encoder_x_forward.1} parent=1 // pred_region
      %s57 = sand.u32 48, 7
      %p58 = scmp.eq.s32.totalorder %s57, 0
      // Predicated region
      $region37: #{encoder_x_forward.1} parent=24 // pred_check
        %p59 = pneg %p58
      $region38: #{encoder_x_forward.1} parent=24 // pred_check_branch
        %61 = sbr.rel (%p59) target = $region40
      $region39: #{encoder_x_forward.1} parent=24 // pred_region
        loop: start=0, step=1, limit=1
        $region41: #{encoder_x_forward.1} parent=39 // loop_pre_header
          _
        $region42: #{encoder_x_forward.1} parent=39 // loop_header
          %s63 = sphi 0, %s67
          %p64 = scmp.ge.s32.totalorder %s63, 1
          %s68 = sphi %s4, %s4
          %s69 = sphi [#allocation2], [#allocation2]
        $region43: #{encoder_x_forward.1} parent=39 // loop_header_branch
          %66 = sbr.rel (%p64) target = $region47
        $region44: #{encoder_x_forward.1} parent=39 // loop_body
          %v70 = vld [vmem:[%s68] sm:$0xff]
          %71 = vst [vmem:[%s69] sm:$0xff] %v70
          %v72 = vld [vmem:[%s68 + $0x8] sm:$0xff]
          %73 = vst [vmem:[%s69 + $0x8] sm:$0xff] %v72
          %v74 = vld [vmem:[%s68 + $0x10] sm:$0xff]
          %75 = vst [vmem:[%s69 + $0x10] sm:$0xff] %v74
          %v76 = vld [vmem:[%s68 + $0x18] sm:$0xff]
          %77 = vst [vmem:[%s69 + $0x18] sm:$0xff] %v76
          %v78 = vld [vmem:[%s68 + $0x20] sm:$0xff]
          %79 = vst [vmem:[%s69 + $0x20] sm:$0xff] %v78
          %v80 = vld [vmem:[%s68 + $0x28] sm:$0xff]
          %81 = vst [vmem:[%s69 + $0x28] sm:$0xff] %v80
        $region45: #{encoder_x_forward.1} parent=39 // loop_footer
          %s67 = sadd.s32 1, %s63
        $region46: #{encoder_x_forward.1} parent=39 // loop_footer_branch
          %62 = sbr.rel target = $region42
        $region47: #{encoder_x_forward.1} parent=39 // loop_exit
          _
      $region40: #{encoder_x_forward.1} parent=24 // pred_fallthru
        _
      %p82 = pneg %p58
      // Predicated region
      $region48: #{encoder_x_forward.1} parent=24 // pred_check
        _
      $region49: #{encoder_x_forward.1} parent=24 // pred_check_branch
        %84 = sbr.rel (%p58) target = $region51
      $region50: #{encoder_x_forward.1} parent=24 // pred_region
        %s85 = sand.u32 48, 7
      $region51: #{encoder_x_forward.1} parent=24 // pred_fallthru
        _
    $region25: #{encoder_x_forward.1} parent=1 // pred_fallthru
      _
    // Predicated region
    $region26: #{encoder_x_forward.1} parent=1 // pred_check
      %p43 = pneg %p39
    $region27: #{encoder_x_forward.1} parent=1 // pred_check_branch
      %45 = sbr.rel (%p43) target = $region29
    $region28: #{encoder_x_forward.1} parent=1 // pred_region
      %s46 = sshllo.u32 0, 48
      loop: start=0, step=1, limit=1
      $region30: #{encoder_x_forward.1} parent=28 // loop_pre_header
        _
      $region31: #{encoder_x_forward.1} parent=28 // loop_header
        %s48 = sphi 0, %s52
        %p49 = scmp.ge.s32.totalorder %s48, 1
        %s53 = sphi %s4, %s4
        %s54 = sphi [#allocation2], [#allocation2]
      $region32: #{encoder_x_forward.1} parent=28 // loop_header_branch
        %51 = sbr.rel (%p49) target = $region36
      $region33: #{encoder_x_forward.1} parent=28 // loop_body
        %v55 = vld [vmem:[%s53] sm:%s46]
        %56 = vst [vmem:[%s54] sm:%s46] %v55
      $region34: #{encoder_x_forward.1} parent=28 // loop_footer
        %s52 = sadd.s32 1, %s48
      $region35: #{encoder_x_forward.1} parent=28 // loop_footer_branch
        %47 = sbr.rel target = $region31
      $region36: #{encoder_x_forward.1} parent=28 // loop_exit
        _
    $region29: #{encoder_x_forward.1} parent=1 // pred_fallthru
      _
    // Predicated region
    $region52: #{encoder_x_forward.1} parent=1 // pred_check
      _
    $region53: #{encoder_x_forward.1} parent=1 // pred_check_branch
      %88 = sbr.rel (0) target = $region55
    $region54: #{encoder_x_forward.1} parent=1 // pred_region
      %89 = vsyncadd [#allocation7], 768
    $region55: #{encoder_x_forward.1} parent=1 // pred_fallthru
      _
    %s90 = scalar_lea.sflag [#allocation7], 1
    %p92 = scmp.lt.u32.totalorder 512, 8
    %p93 = pneg %p92
    // Predicated region
    $region56: #{encoder_x_forward.1} parent=1 // pred_check
      _
    $region57: #{encoder_x_forward.1} parent=1 // pred_check_branch
      %95 = sbr.rel (%p92) target = $region59
    $region58: #{encoder_x_forward.1} parent=1 // pred_region
      %s110 = sand.u32 512, 7
      %p111 = scmp.eq.s32.totalorder %s110, 0
      // Predicated region
      $region71: #{encoder_x_forward.1} parent=58 // pred_check
        %p112 = pneg %p111
      $region72: #{encoder_x_forward.1} parent=58 // pred_check_branch
        %114 = sbr.rel (%p112) target = $region74
      $region73: #{encoder_x_forward.1} parent=58 // pred_region
        loop: start=0, step=1, limit=1
        $region75: #{encoder_x_forward.1} parent=73 // loop_pre_header
          _
        $region76: #{encoder_x_forward.1} parent=73 // loop_header
          %s116 = sphi 0, %s120
          %p117 = scmp.ge.s32.totalorder %s116, 1
          %s121 = sphi %s5, %s5
          %s122 = sphi [#allocation3], [#allocation3]
        $region77: #{encoder_x_forward.1} parent=73 // loop_header_branch
          %119 = sbr.rel (%p117) target = $region81
        $region78: #{encoder_x_forward.1} parent=73 // loop_body
          %v123 = vld [vmem:[%s121] sm:$0xff]
          %124 = vst [vmem:[%s122] sm:$0xff] %v123
          %v125 = vld [vmem:[%s121 + $0x8] sm:$0xff]
          %126 = vst [vmem:[%s122 + $0x8] sm:$0xff] %v125
          %v127 = vld [vmem:[%s121 + $0x10] sm:$0xff]
          %128 = vst [vmem:[%s122 + $0x10] sm:$0xff] %v127
          %v129 = vld [vmem:[%s121 + $0x18] sm:$0xff]
          %130 = vst [vmem:[%s122 + $0x18] sm:$0xff] %v129
          %v131 = vld [vmem:[%s121 + $0x20] sm:$0xff]
          %132 = vst [vmem:[%s122 + $0x20] sm:$0xff] %v131
          %v133 = vld [vmem:[%s121 + $0x28] sm:$0xff]
          %134 = vst [vmem:[%s122 + $0x28] sm:$0xff] %v133
          %v135 = vld [vmem:[%s121 + $0x30] sm:$0xff]
          %136 = vst [vmem:[%s122 + $0x30] sm:$0xff] %v135
          %v137 = vld [vmem:[%s121 + $0x38] sm:$0xff]
          %138 = vst [vmem:[%s122 + $0x38] sm:$0xff] %v137
          %v139 = vld [vmem:[%s121 + $0x40] sm:$0xff]
          %140 = vst [vmem:[%s122 + $0x40] sm:$0xff] %v139
          %v141 = vld [vmem:[%s121 + $0x48] sm:$0xff]
          %142 = vst [vmem:[%s122 + $0x48] sm:$0xff] %v141
          %v143 = vld [vmem:[%s121 + $0x50] sm:$0xff]
          %144 = vst [vmem:[%s122 + $0x50] sm:$0xff] %v143
          %v145 = vld [vmem:[%s121 + $0x58] sm:$0xff]
          %146 = vst [vmem:[%s122 + $0x58] sm:$0xff] %v145
          %v147 = vld [vmem:[%s121 + $0x60] sm:$0xff]
          %148 = vst [vmem:[%s122 + $0x60] sm:$0xff] %v147
          %v149 = vld [vmem:[%s121 + $0x68] sm:$0xff]
          %150 = vst [vmem:[%s122 + $0x68] sm:$0xff] %v149
          %v151 = vld [vmem:[%s121 + $0x70] sm:$0xff]
          %152 = vst [vmem:[%s122 + $0x70] sm:$0xff] %v151
          %v153 = vld [vmem:[%s121 + $0x78] sm:$0xff]
          %154 = vst [vmem:[%s122 + $0x78] sm:$0xff] %v153
          %v155 = vld [vmem:[%s121 + $0x80] sm:$0xff]
          %156 = vst [vmem:[%s122 + $0x80] sm:$0xff] %v155
          %v157 = vld [vmem:[%s121 + $0x88] sm:$0xff]
          %158 = vst [vmem:[%s122 + $0x88] sm:$0xff] %v157
          %v159 = vld [vmem:[%s121 + $0x90] sm:$0xff]
          %160 = vst [vmem:[%s122 + $0x90] sm:$0xff] %v159
          %v161 = vld [vmem:[%s121 + $0x98] sm:$0xff]
          %162 = vst [vmem:[%s122 + $0x98] sm:$0xff] %v161
          %v163 = vld [vmem:[%s121 + $0xa0] sm:$0xff]
          %164 = vst [vmem:[%s122 + $0xa0] sm:$0xff] %v163
          %v165 = vld [vmem:[%s121 + $0xa8] sm:$0xff]
          %166 = vst [vmem:[%s122 + $0xa8] sm:$0xff] %v165
          %v167 = vld [vmem:[%s121 + $0xb0] sm:$0xff]
          %168 = vst [vmem:[%s122 + $0xb0] sm:$0xff] %v167
          %v169 = vld [vmem:[%s121 + $0xb8] sm:$0xff]
          %170 = vst [vmem:[%s122 + $0xb8] sm:$0xff] %v169
          %v171 = vld [vmem:[%s121 + $0xc0] sm:$0xff]
          %172 = vst [vmem:[%s122 + $0xc0] sm:$0xff] %v171
          %v173 = vld [vmem:[%s121 + $0xc8] sm:$0xff]
          %174 = vst [vmem:[%s122 + $0xc8] sm:$0xff] %v173
          %v175 = vld [vmem:[%s121 + $0xd0] sm:$0xff]
          %176 = vst [vmem:[%s122 + $0xd0] sm:$0xff] %v175
          %v177 = vld [vmem:[%s121 + $0xd8] sm:$0xff]
          %178 = vst [vmem:[%s122 + $0xd8] sm:$0xff] %v177
          %v179 = vld [vmem:[%s121 + $0xe0] sm:$0xff]
          %180 = vst [vmem:[%s122 + $0xe0] sm:$0xff] %v179
          %v181 = vld [vmem:[%s121 + $0xe8] sm:$0xff]
          %182 = vst [vmem:[%s122 + $0xe8] sm:$0xff] %v181
          %v183 = vld [vmem:[%s121 + $0xf0] sm:$0xff]
          %184 = vst [vmem:[%s122 + $0xf0] sm:$0xff] %v183
          %v185 = vld [vmem:[%s121 + $0xf8] sm:$0xff]
          %186 = vst [vmem:[%s122 + $0xf8] sm:$0xff] %v185
          %v187 = vld [vmem:[%s121 + $0x100] sm:$0xff]
          %188 = vst [vmem:[%s122 + $0x100] sm:$0xff] %v187
          %v189 = vld [vmem:[%s121 + $0x108] sm:$0xff]
          %190 = vst [vmem:[%s122 + $0x108] sm:$0xff] %v189
          %v191 = vld [vmem:[%s121 + $0x110] sm:$0xff]
          %192 = vst [vmem:[%s122 + $0x110] sm:$0xff] %v191
          %v193 = vld [vmem:[%s121 + $0x118] sm:$0xff]
          %194 = vst [vmem:[%s122 + $0x118] sm:$0xff] %v193
          %v195 = vld [vmem:[%s121 + $0x120] sm:$0xff]
          %196 = vst [vmem:[%s122 + $0x120] sm:$0xff] %v195
          %v197 = vld [vmem:[%s121 + $0x128] sm:$0xff]
          %198 = vst [vmem:[%s122 + $0x128] sm:$0xff] %v197
          %v199 = vld [vmem:[%s121 + $0x130] sm:$0xff]
          %200 = vst [vmem:[%s122 + $0x130] sm:$0xff] %v199
          %v201 = vld [vmem:[%s121 + $0x138] sm:$0xff]
          %202 = vst [vmem:[%s122 + $0x138] sm:$0xff] %v201
          %v203 = vld [vmem:[%s121 + $0x140] sm:$0xff]
          %204 = vst [vmem:[%s122 + $0x140] sm:$0xff] %v203
          %v205 = vld [vmem:[%s121 + $0x148] sm:$0xff]
          %206 = vst [vmem:[%s122 + $0x148] sm:$0xff] %v205
          %v207 = vld [vmem:[%s121 + $0x150] sm:$0xff]
          %208 = vst [vmem:[%s122 + $0x150] sm:$0xff] %v207
          %v209 = vld [vmem:[%s121 + $0x158] sm:$0xff]
          %210 = vst [vmem:[%s122 + $0x158] sm:$0xff] %v209
          %v211 = vld [vmem:[%s121 + $0x160] sm:$0xff]
          %212 = vst [vmem:[%s122 + $0x160] sm:$0xff] %v211
          %v213 = vld [vmem:[%s121 + $0x168] sm:$0xff]
          %214 = vst [vmem:[%s122 + $0x168] sm:$0xff] %v213
          %v215 = vld [vmem:[%s121 + $0x170] sm:$0xff]
          %216 = vst [vmem:[%s122 + $0x170] sm:$0xff] %v215
          %v217 = vld [vmem:[%s121 + $0x178] sm:$0xff]
          %218 = vst [vmem:[%s122 + $0x178] sm:$0xff] %v217
          %v219 = vld [vmem:[%s121 + $0x180] sm:$0xff]
          %220 = vst [vmem:[%s122 + $0x180] sm:$0xff] %v219
          %v221 = vld [vmem:[%s121 + $0x188] sm:$0xff]
          %222 = vst [vmem:[%s122 + $0x188] sm:$0xff] %v221
          %v223 = vld [vmem:[%s121 + $0x190] sm:$0xff]
          %224 = vst [vmem:[%s122 + $0x190] sm:$0xff] %v223
          %v225 = vld [vmem:[%s121 + $0x198] sm:$0xff]
          %226 = vst [vmem:[%s122 + $0x198] sm:$0xff] %v225
          %v227 = vld [vmem:[%s121 + $0x1a0] sm:$0xff]
          %228 = vst [vmem:[%s122 + $0x1a0] sm:$0xff] %v227
          %v229 = vld [vmem:[%s121 + $0x1a8] sm:$0xff]
          %230 = vst [vmem:[%s122 + $0x1a8] sm:$0xff] %v229
          %v231 = vld [vmem:[%s121 + $0x1b0] sm:$0xff]
          %232 = vst [vmem:[%s122 + $0x1b0] sm:$0xff] %v231
          %v233 = vld [vmem:[%s121 + $0x1b8] sm:$0xff]
          %234 = vst [vmem:[%s122 + $0x1b8] sm:$0xff] %v233
          %v235 = vld [vmem:[%s121 + $0x1c0] sm:$0xff]
          %236 = vst [vmem:[%s122 + $0x1c0] sm:$0xff] %v235
          %v237 = vld [vmem:[%s121 + $0x1c8] sm:$0xff]
          %238 = vst [vmem:[%s122 + $0x1c8] sm:$0xff] %v237
          %v239 = vld [vmem:[%s121 + $0x1d0] sm:$0xff]
          %240 = vst [vmem:[%s122 + $0x1d0] sm:$0xff] %v239
          %v241 = vld [vmem:[%s121 + $0x1d8] sm:$0xff]
          %242 = vst [vmem:[%s122 + $0x1d8] sm:$0xff] %v241
          %v243 = vld [vmem:[%s121 + $0x1e0] sm:$0xff]
          %244 = vst [vmem:[%s122 + $0x1e0] sm:$0xff] %v243
          %v245 = vld [vmem:[%s121 + $0x1e8] sm:$0xff]
          %246 = vst [vmem:[%s122 + $0x1e8] sm:$0xff] %v245
          %v247 = vld [vmem:[%s121 + $0x1f0] sm:$0xff]
          %248 = vst [vmem:[%s122 + $0x1f0] sm:$0xff] %v247
          %v249 = vld [vmem:[%s121 + $0x1f8] sm:$0xff]
          %250 = vst [vmem:[%s122 + $0x1f8] sm:$0xff] %v249
        $region79: #{encoder_x_forward.1} parent=73 // loop_footer
          %s120 = sadd.s32 1, %s116
        $region80: #{encoder_x_forward.1} parent=73 // loop_footer_branch
          %115 = sbr.rel target = $region76
        $region81: #{encoder_x_forward.1} parent=73 // loop_exit
          _
      $region74: #{encoder_x_forward.1} parent=58 // pred_fallthru
        _
      %p251 = pneg %p111
      // Predicated region
      $region82: #{encoder_x_forward.1} parent=58 // pred_check
        _
      $region83: #{encoder_x_forward.1} parent=58 // pred_check_branch
        %253 = sbr.rel (%p111) target = $region85
      $region84: #{encoder_x_forward.1} parent=58 // pred_region
        %s254 = sand.u32 512, 7
      $region85: #{encoder_x_forward.1} parent=58 // pred_fallthru
        _
    $region59: #{encoder_x_forward.1} parent=1 // pred_fallthru
      _
    // Predicated region
    $region60: #{encoder_x_forward.1} parent=1 // pred_check
      %p96 = pneg %p92
    $region61: #{encoder_x_forward.1} parent=1 // pred_check_branch
      %98 = sbr.rel (%p96) target = $region63
    $region62: #{encoder_x_forward.1} parent=1 // pred_region
      %s99 = sshllo.u32 0, 512
      loop: start=0, step=1, limit=1
      $region64: #{encoder_x_forward.1} parent=62 // loop_pre_header
        _
      $region65: #{encoder_x_forward.1} parent=62 // loop_header
        %s101 = sphi 0, %s105
        %p102 = scmp.ge.s32.totalorder %s101, 1
        %s106 = sphi %s5, %s5
        %s107 = sphi [#allocation3], [#allocation3]
      $region66: #{encoder_x_forward.1} parent=62 // loop_header_branch
        %104 = sbr.rel (%p102) target = $region70
      $region67: #{encoder_x_forward.1} parent=62 // loop_body
        %v108 = vld [vmem:[%s106] sm:%s99]
        %109 = vst [vmem:[%s107] sm:%s99] %v108
      $region68: #{encoder_x_forward.1} parent=62 // loop_footer
        %s105 = sadd.s32 1, %s101
      $region69: #{encoder_x_forward.1} parent=62 // loop_footer_branch
        %100 = sbr.rel target = $region65
      $region70: #{encoder_x_forward.1} parent=62 // loop_exit
        _
    $region63: #{encoder_x_forward.1} parent=1 // pred_fallthru
      _
    // Predicated region
    $region86: #{encoder_x_forward.1} parent=1 // pred_check
      _
    $region87: #{encoder_x_forward.1} parent=1 // pred_check_branch
      %257 = sbr.rel (0) target = $region89
    $region88: #{encoder_x_forward.1} parent=1 // pred_region
      %258 = vsyncadd %s90, 8192
    $region89: #{encoder_x_forward.1} parent=1 // pred_fallthru
      _
    %v259 = vld [vmem:[#allocation8] sm:$0xff]
    %v260 = vpack.c.bf16 %v259, %v259
    %v261 = vld [vmem:[#allocation8 + $0x8] sm:$0x1]
    %v262 = vld [vmem:[#allocation8 + $0x9] sm:$0x1]
    %v263 = vld [vmem:[#allocation8 + $0xa] sm:$0x1]
    %v264 = vld [vmem:[#allocation8 + $0xb] sm:$0x1]
    %v265 = vld [vmem:[#allocation8 + $0xc] sm:$0x1]
    %v266 = vld [vmem:[#allocation8 + $0xd] sm:$0x1]
    %v267 = vld [vmem:[#allocation8 + $0xe] sm:$0x1]
    %v268 = vld [vmem:[%s0] sm:$0xf]
    %v269 = vld [vmem:[%s0 + $0x4] sm:$0xf]
    %v270 = vld [vmem:[%s0 + $0x8] sm:$0xf]
    %v271 = vld [vmem:[%s0 + $0xc] sm:$0xf]
    %v272 = vld [vmem:[%s0 + $0x10] sm:$0xf]
    %v273 = vld [vmem:[%s0 + $0x14] sm:$0xf]
    %v274 = vld [vmem:[%s0 + $0x18] sm:$0xf]
    %v275 = vld [vmem:[%s0 + $0x1c] sm:$0xf]
    %v276 = vld [vmem:[%s0 + $0x20] sm:$0xf]
    %v277 = vld [vmem:[%s0 + $0x24] sm:$0xf]
    %v278 = vld [vmem:[%s0 + $0x28] sm:$0xf]
    %v279 = vld [vmem:[%s0 + $0x2c] sm:$0xf]
    %v280 = vld [vmem:[%s0 + $0x30] sm:$0xf]
    %v281 = vld [vmem:[%s0 + $0x34] sm:$0xf]
    %v282 = vld [vmem:[%s0 + $0x38] sm:$0xf]
    %v283 = vld [vmem:[%s0 + $0x3c] sm:$0xf]
    %v284 = vld [vmem:[%s0 + $0x40] sm:$0xf]
    %v285 = vld [vmem:[%s0 + $0x44] sm:$0xf]
    %v286 = vld [vmem:[%s0 + $0x48] sm:$0xf]
    %v287 = vld [vmem:[%s0 + $0x4c] sm:$0xf]
    %v288 = vld [vmem:[%s0 + $0x50] sm:$0xf]
    %v289 = vld [vmem:[%s0 + $0x54] sm:$0xf]
    %v290 = vld [vmem:[%s0 + $0x58] sm:$0xf]
    %v291 = vld [vmem:[%s0 + $0x5c] sm:$0xf]
    %v292 = vld [vmem:[%s0 + $0x60] sm:$0xf]
    %v293 = vld [vmem:[%s0 + $0x64] sm:$0xf]
    %v294 = vld [vmem:[%s0 + $0x68] sm:$0xf]
    %v295 = vld [vmem:[%s0 + $0x6c] sm:$0xf]
    %v296 = vld [vmem:[%s0 + $0x70] sm:$0xf]
    %v297 = vld [vmem:[%s0 + $0x74] sm:$0xf]
    %v298 = vld [vmem:[%s0 + $0x78] sm:$0x3]
    %v330 = vunpack.c.l.b16 %v268
    %v331 = vunpack.c.l.b16 %v269
    %v332 = vunpack.c.l.b16 %v270
    %v333 = vunpack.c.l.b16 %v271
    %v334 = vunpack.c.l.b16 %v272
    %v335 = vunpack.c.l.b16 %v273
    %v336 = vunpack.c.l.b16 %v274
    %v337 = vunpack.c.l.b16 %v275
    %v338 = vunpack.c.l.b16 %v276
    %v339 = vunpack.c.l.b16 %v277
    %v340 = vunpack.c.l.b16 %v278
    %v341 = vunpack.c.l.b16 %v279
    %v342 = vunpack.c.l.b16 %v280
    %v343 = vunpack.c.l.b16 %v281
    %v344 = vunpack.c.l.b16 %v282
    %v345 = vunpack.c.l.b16 %v283
    %v346 = vunpack.c.l.b16 %v284
    %v347 = vunpack.c.l.b16 %v285
    %v348 = vunpack.c.l.b16 %v286
    %v349 = vunpack.c.l.b16 %v287
    %v350 = vunpack.c.l.b16 %v288
    %v351 = vunpack.c.l.b16 %v289
    %v352 = vunpack.c.l.b16 %v290
    %v353 = vunpack.c.l.b16 %v291
    %v354 = vunpack.c.l.b16 %v292
    %v355 = vunpack.c.l.b16 %v293
    %v356 = vunpack.c.l.b16 %v294
    %v357 = vunpack.c.l.b16 %v295
    %v358 = vunpack.c.l.b16 %v296
    %v359 = vunpack.c.l.b16 %v297
    %v360 = vunpack.c.l.b16 %v298
    %v361 = vpack.c.b16 %v331, %v330
    %v362 = vpack.c.b16 %v333, %v332
    %v363 = vpack.c.b16 %v335, %v334
    %v364 = vpack.c.b16 %v337, %v336
    %v365 = vpack.c.b16 %v339, %v338
    %v366 = vpack.c.b16 %v341, %v340
    %v367 = vpack.c.b16 %v343, %v342
    %v368 = vpack.c.b16 %v345, %v344
    %v369 = vpack.c.b16 %v347, %v346
    %v370 = vpack.c.b16 %v349, %v348
    %v371 = vpack.c.b16 %v351, %v350
    %v372 = vpack.c.b16 %v353, %v352
    %v373 = vpack.c.b16 %v355, %v354
    %v374 = vpack.c.b16 %v357, %v356
    %v375 = vpack.c.b16 %v359, %v358
    %v376 = vpack.c.b16 %v360, %v360
    %vm377 = vcmask 64512
    %v379 = vsel %vm377, %v361, 0
    %v382 = vsel %vm377, %v362, 0
    %v385 = vsel %vm377, %v363, 0
    %v388 = vsel %vm377, %v364, 0
    %v391 = vsel %vm377, %v365, 0
    %v394 = vsel %vm377, %v366, 0
    %v397 = vsel %vm377, %v367, 0
    %v400 = vsel %vm377, %v368, 0
    %v403 = vsel %vm377, %v369, 0
    %v406 = vsel %vm377, %v370, 0
    %v409 = vsel %vm377, %v371, 0
    %v412 = vsel %vm377, %v372, 0
    %v415 = vsel %vm377, %v373, 0
    %v418 = vsel %vm377, %v374, 0
    %v421 = vsel %vm377, %v375, 0
    %v424 = vsel %vm377, %v376, 0
    %vm426 = vcmask 1043456
    %v428 = vsel %vm426, %v260, 0
    %430 = vmatprep.subr.bf16.mxu0 0
    %431 = vmatpush1.bf16.msra.mxu0 %v428
    %432 = vmatprep.subr.bf16.mxu0 0
    %433 = vmatpush1.bf16.msra.mxu0 0
    %434 = vmatprep.subr.bf16.mxu0 0
    %435 = vmatpush1.bf16.msra.mxu0 0
    %436 = vmatprep.subr.bf16.mxu0 0
    %437 = vmatpush1.bf16.msra.mxu0 0
    %438 = vmatprep.subr.bf16.mxu0 0
    %439 = vmatpush1.bf16.msra.mxu0 0
    %440 = vmatprep.subr.bf16.mxu0 0
    %441 = vmatpush1.bf16.msra.mxu0 0
    %442 = vmatprep.subr.bf16.mxu0 0
    %443 = vmatpush1.bf16.msra.mxu0 0
    %444 = vmatprep.subr.bf16.mxu0 0
    %445 = vmatpush1.bf16.msra.mxu0 0
    %446 = vmatprep.subr.bf16.mxu0 0
    %447 = vmatpush1.bf16.msra.mxu0 0
    %448 = vmatprep.subr.bf16.mxu0 0
    %449 = vmatpush1.bf16.msra.mxu0 0
    %450 = vmatprep.subr.bf16.mxu0 0
    %451 = vmatpush1.bf16.msra.mxu0 0
    %452 = vmatprep.subr.bf16.mxu0 0
    %453 = vmatpush1.bf16.msra.mxu0 0
    %454 = vmatprep.subr.bf16.mxu0 0
    %455 = vmatpush1.bf16.msra.mxu0 0
    %456 = vmatprep.subr.bf16.mxu0 0
    %457 = vmatpush1.bf16.msra.mxu0 0
    %458 = vmatprep.subr.bf16.mxu0 0
    %459 = vmatpush1.bf16.msra.mxu0 0
    %460 = vmatprep.subr.bf16.mxu0 0
    %461 = vmatpush1.bf16.msra.mxu0 0
    %462 = vmatprep.mubr.bf16.mxu0 0
    %463 = vmatmul.mubr.bf16.gmra.mrb[0].mxu0 %v379
    %v464 = vpop.f32.mrb[0].mxu0
    %v465 = vadd.f32 0.0, %v464
    %v466 = vpop.f32.mrb[0].mxu0
    %v467 = vpop.f32.mrb[0].mxu0
    %v468 = vadd.f32 0.0, %v467
    %v469 = vpop.f32.mrb[0].mxu0
    %470 = vmatprep.mubr.bf16.mxu0 0
    %471 = vmatmul.mubr.bf16.gmra.mrb[0].mxu0 %v382
    %v472 = vpop.f32.mrb[0].mxu0
    %v473 = vadd.f32 0.0, %v472
    %v474 = vpop.f32.mrb[0].mxu0
    %v475 = vpop.f32.mrb[0].mxu0
    %v476 = vadd.f32 0.0, %v475
    %v477 = vpop.f32.mrb[0].mxu0
    %478 = vmatprep.mubr.bf16.mxu0 0
    %479 = vmatmul.mubr.bf16.gmra.mrb[0].mxu0 %v385
    %v480 = vpop.f32.mrb[0].mxu0
    %v481 = vadd.f32 0.0, %v480
    %v482 = vpop.f32.mrb[0].mxu0
    %v483 = vpop.f32.mrb[0].mxu0
    %v484 = vadd.f32 0.0, %v483
    %v485 = vpop.f32.mrb[0].mxu0
    %486 = vmatprep.mubr.bf16.mxu0 0
    %487 = vmatmul.mubr.bf16.gmra.mrb[0].mxu0 %v388
    %v488 = vpop.f32.mrb[0].mxu0
    %v489 = vadd.f32 0.0, %v488
    %v490 = vpop.f32.mrb[0].mxu0
    %v491 = vpop.f32.mrb[0].mxu0
    %v492 = vadd.f32 0.0, %v491
    %v493 = vpop.f32.mrb[0].mxu0
    %494 = vmatprep.mubr.bf16.mxu0 0
    %495 = vmatmul.mubr.bf16.gmra.mrb[0].mxu0 %v391
    %v496 = vpop.f32.mrb[0].mxu0
    %v497 = vadd.f32 0.0, %v496
    %v498 = vpop.f32.mrb[0].mxu0
    %v499 = vpop.f32.mrb[0].mxu0
    %v500 = vadd.f32 0.0, %v499
    %v501 = vpop.f32.mrb[0].mxu0
    %502 = vmatprep.mubr.bf16.mxu0 0
    %503 = vmatmul.mubr.bf16.gmra.mrb[0].mxu0 %v394
    %v504 = vpop.f32.mrb[0].mxu0
    %v505 = vadd.f32 0.0, %v504
    %v506 = vpop.f32.mrb[0].mxu0
    %v507 = vpop.f32.mrb[0].mxu0
    %v508 = vadd.f32 0.0, %v507
    %v509 = vpop.f32.mrb[0].mxu0
    %510 = vmatprep.mubr.bf16.mxu0 0
    %511 = vmatmul.mubr.bf16.gmra.mrb[0].mxu0 %v397
    %v512 = vpop.f32.mrb[0].mxu0
    %v513 = vadd.f32 0.0, %v512
    %v514 = vpop.f32.mrb[0].mxu0
    %v515 = vpop.f32.mrb[0].mxu0
    %v516 = vadd.f32 0.0, %v515
    %v517 = vpop.f32.mrb[0].mxu0
    %518 = vmatprep.mubr.bf16.mxu0 0
    %519 = vmatmul.mubr.bf16.gmra.mrb[0].mxu0 %v400
    %v520 = vpop.f32.mrb[0].mxu0
    %v521 = vadd.f32 0.0, %v520
    %v522 = vpop.f32.mrb[0].mxu0
    %v523 = vpop.f32.mrb[0].mxu0
    %v524 = vadd.f32 0.0, %v523
    %v525 = vpop.f32.mrb[0].mxu0
    %526 = vmatprep.mubr.bf16.mxu0 0
    %527 = vmatmul.mubr.bf16.gmra.mrb[0].mxu0 %v403
    %v528 = vpop.f32.mrb[0].mxu0
    %v529 = vadd.f32 0.0, %v528
    %v530 = vpop.f32.mrb[0].mxu0
    %v531 = vpop.f32.mrb[0].mxu0
    %v532 = vadd.f32 0.0, %v531
    %v533 = vpop.f32.mrb[0].mxu0
    %534 = vmatprep.mubr.bf16.mxu0 0
    %535 = vmatmul.mubr.bf16.gmra.mrb[0].mxu0 %v406
    %v536 = vpop.f32.mrb[0].mxu0
    %v537 = vadd.f32 0.0, %v536
    %v538 = vpop.f32.mrb[0].mxu0
    %v539 = vpop.f32.mrb[0].mxu0
    %v540 = vadd.f32 0.0, %v539
    %v541 = vpop.f32.mrb[0].mxu0
    %542 = vmatprep.mubr.bf16.mxu0 0
    %543 = vmatmul.mubr.bf16.gmra.mrb[0].mxu0 %v409
    %v544 = vpop.f32.mrb[0].mxu0
    %v545 = vadd.f32 0.0, %v544
    %v546 = vpop.f32.mrb[0].mxu0
    %v547 = vpop.f32.mrb[0].mxu0
    %v548 = vadd.f32 0.0, %v547
    %v549 = vpop.f32.mrb[0].mxu0
    %550 = vmatprep.mubr.bf16.mxu0 0
    %551 = vmatmul.mubr.bf16.gmra.mrb[0].mxu0 %v412
    %v552 = vpop.f32.mrb[0].mxu0
    %v553 = vadd.f32 0.0, %v552
    %v554 = vpop.f32.mrb[0].mxu0
    %v555 = vpop.f32.mrb[0].mxu0
    %v556 = vadd.f32 0.0, %v555
    %v557 = vpop.f32.mrb[0].mxu0
    %558 = vmatprep.mubr.bf16.mxu0 0
    %559 = vmatmul.mubr.bf16.gmra.mrb[0].mxu0 %v415
    %v560 = vpop.f32.mrb[0].mxu0
    %v561 = vadd.f32 0.0, %v560
    %v562 = vpop.f32.mrb[0].mxu0
    %v563 = vpop.f32.mrb[0].mxu0
    %v564 = vadd.f32 0.0, %v563
    %v565 = vpop.f32.mrb[0].mxu0
    %566 = vmatprep.mubr.bf16.mxu0 0
    %567 = vmatmul.mubr.bf16.gmra.mrb[0].mxu0 %v418
    %v568 = vpop.f32.mrb[0].mxu0
    %v569 = vadd.f32 0.0, %v568
    %v570 = vpop.f32.mrb[0].mxu0
    %v571 = vpop.f32.mrb[0].mxu0
    %v572 = vadd.f32 0.0, %v571
    %v573 = vpop.f32.mrb[0].mxu0
    %574 = vmatprep.mubr.bf16.mxu0 0
    %575 = vmatmul.mubr.bf16.gmra.mrb[0].mxu0 %v421
    %v576 = vpop.f32.mrb[0].mxu0
    %v577 = vadd.f32 0.0, %v576
    %v578 = vpop.f32.mrb[0].mxu0
    %v579 = vpop.f32.mrb[0].mxu0
    %v580 = vadd.f32 0.0, %v579
    %v581 = vpop.f32.mrb[0].mxu0
    %582 = vmatprep.mubr.bf16.mxu0 0
    %583 = vmatmul.mubr.bf16.gmra.mrb[0].mxu0 %v424
    %v584 = vpop.f32.mrb[0].mxu0
    %v585 = vadd.f32 0.0, %v584
    %v586 = vpop.f32.mrb[0].mxu0
    %v587 = vpop.f32.mrb[0].mxu0
    %v588 = vpop.f32.mrb[0].mxu0
    %589 = vdwg.mxu0
    %vm590 = vcmask 130048
    %v591 = vsel %vm590, %v465, 0.0
    %v592 = vsel %vm590, %v468, 0.0
    %v593 = vadd.f32 %v591, %v592
    %v594 = vsel %vm590, %v473, 0.0
    %v595 = vadd.f32 %v593, %v594
    %v596 = vsel %vm590, %v476, 0.0
    %v597 = vadd.f32 %v595, %v596
    %v598 = vsel %vm590, %v481, 0.0
    %v599 = vadd.f32 %v597, %v598
    %v600 = vsel %vm590, %v484, 0.0
    %v601 = vadd.f32 %v599, %v600
    %v602 = vsel %vm590, %v489, 0.0
    %v603 = vadd.f32 %v601, %v602
    %v604 = vsel %vm590, %v492, 0.0
    %v605 = vadd.f32 %v603, %v604
    %v606 = vsel %vm590, %v497, 0.0
    %v607 = vadd.f32 %v605, %v606
    %v608 = vsel %vm590, %v500, 0.0
    %v609 = vadd.f32 %v607, %v608
    %v610 = vsel %vm590, %v505, 0.0
    %v611 = vadd.f32 %v609, %v610
    %v612 = vsel %vm590, %v508, 0.0
    %v613 = vadd.f32 %v611, %v612
    %v614 = vsel %vm590, %v513, 0.0
    %v615 = vadd.f32 %v613, %v614
    %v616 = vsel %vm590, %v516, 0.0
    %v617 = vadd.f32 %v615, %v616
    %v618 = vsel %vm590, %v521, 0.0
    %v619 = vadd.f32 %v617, %v618
    %v620 = vsel %vm590, %v524, 0.0
    %v621 = vadd.f32 %v619, %v620
    %v622 = vsel %vm590, %v529, 0.0
    %v623 = vadd.f32 %v621, %v622
    %v624 = vsel %vm590, %v532, 0.0
    %v625 = vadd.f32 %v623, %v624
    %v626 = vsel %vm590, %v537, 0.0
    %v627 = vadd.f32 %v625, %v626
    %v628 = vsel %vm590, %v540, 0.0
    %v629 = vadd.f32 %v627, %v628
    %v630 = vsel %vm590, %v545, 0.0
    %v631 = vadd.f32 %v629, %v630
    %v632 = vsel %vm590, %v548, 0.0
    %v633 = vadd.f32 %v631, %v632
    %v634 = vsel %vm590, %v553, 0.0
    %v635 = vadd.f32 %v633, %v634
    %v636 = vsel %vm590, %v556, 0.0
    %v637 = vadd.f32 %v635, %v636
    %v638 = vsel %vm590, %v561, 0.0
    %v639 = vadd.f32 %v637, %v638
    %v640 = vsel %vm590, %v564, 0.0
    %v641 = vadd.f32 %v639, %v640
    %v642 = vsel %vm590, %v569, 0.0
    %v643 = vadd.f32 %v641, %v642
    %v644 = vsel %vm590, %v572, 0.0
    %v645 = vadd.f32 %v643, %v644
    %v646 = vsel %vm590, %v577, 0.0
    %v647 = vadd.f32 %v645, %v646
    %v648 = vsel %vm590, %v580, 0.0
    %v649 = vadd.f32 %v647, %v648
    %vm650 = vcmask 125952
    %v651 = vsel %vm650, %v585, 0.0
    %v652 = vadd.f32 %v649, %v651
    %v653 = vrot.slane %v652, 4
    %v654 = vadd.f32 %v652, %v653
    %v655 = vrot.slane %v654, 2
    %v656 = vadd.f32 %v654, %v655
    %v657 = vrot.slane %v656, 1
    %v658 = vadd.f32 %v656, %v657
    %v659 = vmul.f32 %v465, %v465
    %v660 = vmul.f32 %v468, %v468
    %v661 = vmul.f32 %v473, %v473
    %v662 = vmul.f32 %v476, %v476
    %v663 = vmul.f32 %v481, %v481
    %v664 = vmul.f32 %v484, %v484
    %v665 = vmul.f32 %v489, %v489
    %v666 = vmul.f32 %v492, %v492
    %v667 = vmul.f32 %v497, %v497
    %v668 = vmul.f32 %v500, %v500
    %v669 = vmul.f32 %v505, %v505
    %v670 = vmul.f32 %v508, %v508
    %v671 = vmul.f32 %v513, %v513
    %v672 = vmul.f32 %v516, %v516
    %v673 = vmul.f32 %v521, %v521
    %v674 = vmul.f32 %v524, %v524
    %v675 = vmul.f32 %v529, %v529
    %v676 = vmul.f32 %v532, %v532
    %v677 = vmul.f32 %v537, %v537
    %v678 = vmul.f32 %v540, %v540
    %v679 = vmul.f32 %v545, %v545
    %v680 = vmul.f32 %v548, %v548
    %v681 = vmul.f32 %v553, %v553
    %v682 = vmul.f32 %v556, %v556
    %v683 = vmul.f32 %v561, %v561
    %v684 = vmul.f32 %v564, %v564
    %v685 = vmul.f32 %v569, %v569
    %v686 = vmul.f32 %v572, %v572
    %v687 = vmul.f32 %v577, %v577
    %v688 = vmul.f32 %v580, %v580
    %v689 = vmul.f32 %v585, %v585
    %v690 = vsel %vm590, %v659, 0.0
    %v691 = vsel %vm590, %v660, 0.0
    %v692 = vadd.f32 %v690, %v691
    %v693 = vsel %vm590, %v661, 0.0
    %v694 = vadd.f32 %v692, %v693
    %v695 = vsel %vm590, %v662, 0.0
    %v696 = vadd.f32 %v694, %v695
    %v697 = vsel %vm590, %v663, 0.0
    %v698 = vadd.f32 %v696, %v697
    %v699 = vsel %vm590, %v664, 0.0
    %v700 = vadd.f32 %v698, %v699
    %v701 = vsel %vm590, %v665, 0.0
    %v702 = vadd.f32 %v700, %v701
    %v703 = vsel %vm590, %v666, 0.0
    %v704 = vadd.f32 %v702, %v703
    %v705 = vsel %vm590, %v667, 0.0
    %v706 = vadd.f32 %v704, %v705
    %v707 = vsel %vm590, %v668, 0.0
    %v708 = vadd.f32 %v706, %v707
    %v709 = vsel %vm590, %v669, 0.0
    %v710 = vadd.f32 %v708, %v709
    %v711 = vsel %vm590, %v670, 0.0
    %v712 = vadd.f32 %v710, %v711
    %v713 = vsel %vm590, %v671, 0.0
    %v714 = vadd.f32 %v712, %v713
    %v715 = vsel %vm590, %v672, 0.0
    %v716 = vadd.f32 %v714, %v715
    %v717 = vsel %vm590, %v673, 0.0
    %v718 = vadd.f32 %v716, %v717
    %v719 = vsel %vm590, %v674, 0.0
    %v720 = vadd.f32 %v718, %v719
    %v721 = vsel %vm590, %v675, 0.0
    %v722 = vadd.f32 %v720, %v721
    %v723 = vsel %vm590, %v676, 0.0
    %v724 = vadd.f32 %v722, %v723
    %v725 = vsel %vm590, %v677, 0.0
    %v726 = vadd.f32 %v724, %v725
    %v727 = vsel %vm590, %v678, 0.0
    %v728 = vadd.f32 %v726, %v727
    %v729 = vsel %vm590, %v679, 0.0
    %v730 = vadd.f32 %v728, %v729
    %v731 = vsel %vm590, %v680, 0.0
    %v732 = vadd.f32 %v730, %v731
    %v733 = vsel %vm590, %v681, 0.0
    %v734 = vadd.f32 %v732, %v733
    %v735 = vsel %vm590, %v682, 0.0
    %v736 = vadd.f32 %v734, %v735
    %v737 = vsel %vm590, %v683, 0.0
    %v738 = vadd.f32 %v736, %v737
    %v739 = vsel %vm590, %v684, 0.0
    %v740 = vadd.f32 %v738, %v739
    %v741 = vsel %vm590, %v685, 0.0
    %v742 = vadd.f32 %v740, %v741
    %v743 = vsel %vm590, %v686, 0.0
    %v744 = vadd.f32 %v742, %v743
    %v745 = vsel %vm590, %v687, 0.0
    %v746 = vadd.f32 %v744, %v745
    %v747 = vsel %vm590, %v688, 0.0
    %v748 = vadd.f32 %v746, %v747
    %v749 = vsel %vm650, %v689, 0.0
    %v750 = vadd.f32 %v748, %v749
    %v751 = vrot.slane %v750, 4
    %v752 = vadd.f32 %v750, %v751
    %v753 = vrot.slane %v752, 2
    %v754 = vadd.f32 %v752, %v753
    %v755 = vrot.slane %v754, 1
    %v756 = vadd.f32 %v754, %v755
    %v757 = vmul.f32 %v658, 0.0040983604
    %v758 = vmul.f32 %v756, 0.0040983604
    %v759 = vmul.f32 %v757, %v757
    %v760 = vsub.f32 %v758, %v759
    %v761 = vmax.f32 %v760, 0.0
    %v762 = vsub.f32 %v465, %v757
    %v763 = vsub.f32 %v468, %v757
    %v764 = vsub.f32 %v473, %v757
    %v765 = vsub.f32 %v476, %v757
    %v766 = vsub.f32 %v481, %v757
    %v767 = vsub.f32 %v484, %v757
    %v768 = vsub.f32 %v489, %v757
    %v769 = vsub.f32 %v492, %v757
    %v770 = vsub.f32 %v497, %v757
    %v771 = vsub.f32 %v500, %v757
    %v772 = vsub.f32 %v505, %v757
    %v773 = vsub.f32 %v508, %v757
    %v774 = vsub.f32 %v513, %v757
    %v775 = vsub.f32 %v516, %v757
    %v776 = vsub.f32 %v521, %v757
    %v777 = vsub.f32 %v524, %v757
    %v778 = vsub.f32 %v529, %v757
    %v779 = vsub.f32 %v532, %v757
    %v780 = vsub.f32 %v537, %v757
    %v781 = vsub.f32 %v540, %v757
    %v782 = vsub.f32 %v545, %v757
    %v783 = vsub.f32 %v548, %v757
    %v784 = vsub.f32 %v553, %v757
    %v785 = vsub.f32 %v556, %v757
    %v786 = vsub.f32 %v561, %v757
    %v787 = vsub.f32 %v564, %v757
    %v788 = vsub.f32 %v569, %v757
    %v789 = vsub.f32 %v572, %v757
    %v790 = vsub.f32 %v577, %v757
    %v791 = vsub.f32 %v580, %v757
    %v792 = vsub.f32 %v585, %v757
    %v793 = vadd.f32 %v761, 1e-05
    %v794 = vrsqrt.pop %v793
    %v795 = vmul.f32 %v762, %v794
    %v796 = vmul.f32 %v763, %v794
    %v797 = vmul.f32 %v764, %v794
    %v798 = vmul.f32 %v765, %v794
    %v799 = vmul.f32 %v766, %v794
    %v800 = vmul.f32 %v767, %v794
    %v801 = vmul.f32 %v768, %v794
    %v802 = vmul.f32 %v769, %v794
    %v803 = vmul.f32 %v770, %v794
    %v804 = vmul.f32 %v771, %v794
    %v805 = vmul.f32 %v772, %v794
    %v806 = vmul.f32 %v773, %v794
    %v807 = vmul.f32 %v774, %v794
    %v808 = vmul.f32 %v775, %v794
    %v809 = vmul.f32 %v776, %v794
    %v810 = vmul.f32 %v777, %v794
    %v811 = vmul.f32 %v778, %v794
    %v812 = vmul.f32 %v779, %v794
    %v813 = vmul.f32 %v780, %v794
    %v814 = vmul.f32 %v781, %v794
    %v815 = vmul.f32 %v782, %v794
    %v816 = vmul.f32 %v783, %v794
    %v817 = vmul.f32 %v784, %v794
    %v818 = vmul.f32 %v785, %v794
    %v819 = vmul.f32 %v786, %v794
    %v820 = vmul.f32 %v787, %v794
    %v821 = vmul.f32 %v788, %v794
    %v822 = vmul.f32 %v789, %v794
    %v823 = vmul.f32 %v790, %v794
    %v824 = vmul.f32 %v791, %v794
    %v825 = vmul.f32 %v792, %v794
    %v826 = vlaneseq
    %v827 = vshrl.u32 %v826, 7
    %v828 = vsub.s32 0, %v827
    %v829 = vrot.slane %v261, %v828
    %v830 = vmul.f32 %v795, %v829
    %v831 = vmul.f32 %v796, %v829
    %v832 = vmul.f32 %v797, %v829
    %v833 = vmul.f32 %v798, %v829
    %v834 = vmul.f32 %v799, %v829
    %v835 = vmul.f32 %v800, %v829
    %v836 = vmul.f32 %v801, %v829
    %v837 = vmul.f32 %v802, %v829
    %v838 = vmul.f32 %v803, %v829
    %v839 = vmul.f32 %v804, %v829
    %v840 = vmul.f32 %v805, %v829
    %v841 = vmul.f32 %v806, %v829
    %v842 = vmul.f32 %v807, %v829
    %v843 = vmul.f32 %v808, %v829
    %v844 = vmul.f32 %v809, %v829
    %v845 = vmul.f32 %v810, %v829
    %v846 = vmul.f32 %v811, %v829
    %v847 = vmul.f32 %v812, %v829
    %v848 = vmul.f32 %v813, %v829
    %v849 = vmul.f32 %v814, %v829
    %v850 = vmul.f32 %v815, %v829
    %v851 = vmul.f32 %v816, %v829
    %v852 = vmul.f32 %v817, %v829
    %v853 = vmul.f32 %v818, %v829
    %v854 = vmul.f32 %v819, %v829
    %v855 = vmul.f32 %v820, %v829
    %v856 = vmul.f32 %v821, %v829
    %v857 = vmul.f32 %v822, %v829
    %v858 = vmul.f32 %v823, %v829
    %v859 = vmul.f32 %v824, %v829
    %v860 = vmul.f32 %v825, %v829
    %v861 = vlaneseq
    %v862 = vshrl.u32 %v861, 7
    %v863 = vsub.s32 0, %v862
    %v864 = vrot.slane %v262, %v863
    %v865 = vadd.f32 %v830, %v864
    %v866 = vadd.f32 %v831, %v864
    %v867 = vadd.f32 %v832, %v864
    %v868 = vadd.f32 %v833, %v864
    %v869 = vadd.f32 %v834, %v864
    %v870 = vadd.f32 %v835, %v864
    %v871 = vadd.f32 %v836, %v864
    %v872 = vadd.f32 %v837, %v864
    %v873 = vadd.f32 %v838, %v864
    %v874 = vadd.f32 %v839, %v864
    %v875 = vadd.f32 %v840, %v864
    %v876 = vadd.f32 %v841, %v864
    %v877 = vadd.f32 %v842, %v864
    %v878 = vadd.f32 %v843, %v864
    %v879 = vadd.f32 %v844, %v864
    %v880 = vadd.f32 %v845, %v864
    %v881 = vadd.f32 %v846, %v864
    %v882 = vadd.f32 %v847, %v864
    %v883 = vadd.f32 %v848, %v864
    %v884 = vadd.f32 %v849, %v864
    %v885 = vadd.f32 %v850, %v864
    %v886 = vadd.f32 %v851, %v864
    %v887 = vadd.f32 %v852, %v864
    %v888 = vadd.f32 %v853, %v864
    %v889 = vadd.f32 %v854, %v864
    %v890 = vadd.f32 %v855, %v864
    %v891 = vadd.f32 %v856, %v864
    %v892 = vadd.f32 %v857, %v864
    %v893 = vadd.f32 %v858, %v864
    %v894 = vadd.f32 %v859, %v864
    %v895 = vadd.f32 %v860, %v864
    %vm896 = vcmp.ge.f32.partialorder %v865, 0.0
    %vm897 = vcmp.ge.f32.partialorder %v866, 0.0
    %vm898 = vcmp.ge.f32.partialorder %v867, 0.0
    %vm899 = vcmp.ge.f32.partialorder %v868, 0.0
    %vm900 = vcmp.ge.f32.partialorder %v869, 0.0
    %vm901 = vcmp.ge.f32.partialorder %v870, 0.0
    %vm902 = vcmp.ge.f32.partialorder %v871, 0.0
    %vm903 = vcmp.ge.f32.partialorder %v872, 0.0
    %vm904 = vcmp.ge.f32.partialorder %v873, 0.0
    %vm905 = vcmp.ge.f32.partialorder %v874, 0.0
    %vm906 = vcmp.ge.f32.partialorder %v875, 0.0
    %vm907 = vcmp.ge.f32.partialorder %v876, 0.0
    %vm908 = vcmp.ge.f32.partialorder %v877, 0.0
    %vm909 = vcmp.ge.f32.partialorder %v878, 0.0
    %vm910 = vcmp.ge.f32.partialorder %v879, 0.0
    %vm911 = vcmp.ge.f32.partialorder %v880, 0.0
    %vm912 = vcmp.ge.f32.partialorder %v881, 0.0
    %vm913 = vcmp.ge.f32.partialorder %v882, 0.0
    %vm914 = vcmp.ge.f32.partialorder %v883, 0.0
    %vm915 = vcmp.ge.f32.partialorder %v884, 0.0
    %vm916 = vcmp.ge.f32.partialorder %v885, 0.0
    %vm917 = vcmp.ge.f32.partialorder %v886, 0.0
    %vm918 = vcmp.ge.f32.partialorder %v887, 0.0
    %vm919 = vcmp.ge.f32.partialorder %v888, 0.0
    %vm920 = vcmp.ge.f32.partialorder %v889, 0.0
    %vm921 = vcmp.ge.f32.partialorder %v890, 0.0
    %vm922 = vcmp.ge.f32.partialorder %v891, 0.0
    %vm923 = vcmp.ge.f32.partialorder %v892, 0.0
    %vm924 = vcmp.ge.f32.partialorder %v893, 0.0
    %vm925 = vcmp.ge.f32.partialorder %v894, 0.0
    %vm926 = vcmp.ge.f32.partialorder %v895, 0.0
    %v927 = vmul.f32 %v865, 0.2
    %v928 = vmul.f32 %v866, 0.2
    %v929 = vmul.f32 %v867, 0.2
    %v930 = vmul.f32 %v868, 0.2
    %v931 = vmul.f32 %v869, 0.2
    %v932 = vmul.f32 %v870, 0.2
    %v933 = vmul.f32 %v871, 0.2
    %v934 = vmul.f32 %v872, 0.2
    %v935 = vmul.f32 %v873, 0.2
    %v936 = vmul.f32 %v874, 0.2
    %v937 = vmul.f32 %v875, 0.2
    %v938 = vmul.f32 %v876, 0.2
    %v939 = vmul.f32 %v877, 0.2
    %v940 = vmul.f32 %v878, 0.2
    %v941 = vmul.f32 %v879, 0.2
    %v942 = vmul.f32 %v880, 0.2
    %v943 = vmul.f32 %v881, 0.2
    %v944 = vmul.f32 %v882, 0.2
    %v945 = vmul.f32 %v883, 0.2
    %v946 = vmul.f32 %v884, 0.2
    %v947 = vmul.f32 %v885, 0.2
    %v948 = vmul.f32 %v886, 0.2
    %v949 = vmul.f32 %v887, 0.2
    %v950 = vmul.f32 %v888, 0.2
    %v951 = vmul.f32 %v889, 0.2
    %v952 = vmul.f32 %v890, 0.2
    %v953 = vmul.f32 %v891, 0.2
    %v954 = vmul.f32 %v892, 0.2
    %v955 = vmul.f32 %v893, 0.2
    %v956 = vmul.f32 %v894, 0.2
    %v957 = vmul.f32 %v895, 0.2
    %v958 = vsel %vm896, %v865, %v927
    %v959 = vsel %vm897, %v866, %v928
    %v960 = vsel %vm898, %v867, %v929
    %v961 = vsel %vm899, %v868, %v930
    %v962 = vsel %vm900, %v869, %v931
    %v963 = vsel %vm901, %v870, %v932
    %v964 = vsel %vm902, %v871, %v933
    %v965 = vsel %vm903, %v872, %v934
    %v966 = vsel %vm904, %v873, %v935
    %v967 = vsel %vm905, %v874, %v936
    %v968 = vsel %vm906, %v875, %v937
    %v969 = vsel %vm907, %v876, %v938
    %v970 = vsel %vm908, %v877, %v939
    %v971 = vsel %vm909, %v878, %v940
    %v972 = vsel %vm910, %v879, %v941
    %v973 = vsel %vm911, %v880, %v942
    %v974 = vsel %vm912, %v881, %v943
    %v975 = vsel %vm913, %v882, %v944
    %v976 = vsel %vm914, %v883, %v945
    %v977 = vsel %vm915, %v884, %v946
    %v978 = vsel %vm916, %v885, %v947
    %v979 = vsel %vm917, %v886, %v948
    %v980 = vsel %vm918, %v887, %v949
    %v981 = vsel %vm919, %v888, %v950
    %v982 = vsel %vm920, %v889, %v951
    %v983 = vsel %vm921, %v890, %v952
    %v984 = vsel %vm922, %v891, %v953
    %v985 = vsel %vm923, %v892, %v954
    %v986 = vsel %vm924, %v893, %v955
    %v987 = vsel %vm925, %v894, %v956
    %v988 = vsel %vm926, %v895, %v957
    %v989 = vpack.c.bf16 %v959, %v958
    %v990 = vpack.c.bf16 %v961, %v960
    %v991 = vpack.c.bf16 %v963, %v962
    %v992 = vpack.c.bf16 %v965, %v964
    %v993 = vpack.c.bf16 %v967, %v966
    %v994 = vpack.c.bf16 %v969, %v968
    %v995 = vpack.c.bf16 %v971, %v970
    %v996 = vpack.c.bf16 %v973, %v972
    %v997 = vpack.c.bf16 %v975, %v974
    %v998 = vpack.c.bf16 %v977, %v976
    %v999 = vpack.c.bf16 %v979, %v978
    %v1000 = vpack.c.bf16 %v981, %v980
    %v1001 = vpack.c.bf16 %v983, %v982
    %v1002 = vpack.c.bf16 %v985, %v984
    %v1003 = vpack.c.bf16 %v987, %v986
    %v1004 = vpack.c.bf16 %v988, %v988
    %v1005 = vld [vmem:[%s2] sm:$0xff]
    %v1006 = vld [vmem:[%s2 + $0x8] sm:$0xff]
    %v1007 = vld [vmem:[%s2 + $0x10] sm:$0xff]
    %v1008 = vld [vmem:[%s2 + $0x18] sm:$0xff]
    %v1009 = vld [vmem:[%s2 + $0x20] sm:$0xff]
    %v1010 = vld [vmem:[%s2 + $0x28] sm:$0xff]
    %v1011 = vld [vmem:[%s2 + $0x30] sm:$0xff]
    %v1012 = vld [vmem:[%s2 + $0x38] sm:$0xff]
    %v1013 = vld [vmem:[%s2 + $0x40] sm:$0xff]
    %v1014 = vld [vmem:[%s2 + $0x48] sm:$0xff]
    %v1015 = vld [vmem:[%s2 + $0x50] sm:$0xff]
    %v1016 = vld [vmem:[%s2 + $0x58] sm:$0xff]
    %v1017 = vld [vmem:[%s2 + $0x60] sm:$0xff]
    %v1018 = vld [vmem:[%s2 + $0x68] sm:$0xff]
    %v1019 = vld [vmem:[%s2 + $0x70] sm:$0xff]
    %v1020 = vld [vmem:[%s2 + $0x78] sm:$0xff]
    %v1021 = vld [vmem:[%s2 + $0x80] sm:$0xff]
    %v1022 = vld [vmem:[%s2 + $0x88] sm:$0xff]
    %v1023 = vld [vmem:[%s2 + $0x90] sm:$0xff]
    %v1024 = vld [vmem:[%s2 + $0x98] sm:$0xff]
    %v1025 = vld [vmem:[%s2 + $0xa0] sm:$0xff]
    %v1026 = vld [vmem:[%s2 + $0xa8] sm:$0xff]
    %v1027 = vld [vmem:[%s2 + $0xb0] sm:$0xff]
    %v1028 = vld [vmem:[%s2 + $0xb8] sm:$0xff]
    %v1029 = vld [vmem:[%s2 + $0xc0] sm:$0xff]
    %v1030 = vld [vmem:[%s2 + $0xc8] sm:$0xff]
    %v1031 = vld [vmem:[%s2 + $0xd0] sm:$0xff]
    %v1032 = vld [vmem:[%s2 + $0xd8] sm:$0xff]
    %v1033 = vld [vmem:[%s2 + $0xe0] sm:$0xff]
    %v1034 = vld [vmem:[%s2 + $0xe8] sm:$0xff]
    %v1035 = vld [vmem:[%s2 + $0xf0] sm:$0xff]
    %v1036 = vld [vmem:[%s2 + $0xf8] sm:$0xff]
    %v1037 = vld [vmem:[%s2 + $0x100] sm:$0xff]
    %v1038 = vld [vmem:[%s2 + $0x108] sm:$0xff]
    %v1039 = vld [vmem:[%s2 + $0x110] sm:$0xff]
    %v1040 = vld [vmem:[%s2 + $0x118] sm:$0xff]
    %v1041 = vld [vmem:[%s2 + $0x120] sm:$0xff]
    %v1042 = vld [vmem:[%s2 + $0x128] sm:$0xff]
    %v1043 = vld [vmem:[%s2 + $0x130] sm:$0xff]
    %v1044 = vld [vmem:[%s2 + $0x138] sm:$0xff]
    %v1045 = vld [vmem:[%s3] sm:$0xf]
    %v1046 = vld [vmem:[%s3 + $0x4] sm:$0xf]
    %v1047 = vld [vmem:[%s3 + $0x8] sm:$0xf]
    %v1048 = vld [vmem:[%s3 + $0xc] sm:$0xf]
    %v1049 = vld [vmem:[%s3 + $0x10] sm:$0xf]
    %v1050 = vld [vmem:[%s3 + $0x14] sm:$0xf]
    %v1051 = vld [vmem:[%s3 + $0x18] sm:$0xf]
    %v1052 = vld [vmem:[%s3 + $0x1c] sm:$0xf]
    %v1053 = vld [vmem:[%s3 + $0x20] sm:$0xf]
    %v1054 = vld [vmem:[%s3 + $0x24] sm:$0xf]
    %v1055 = vld [vmem:[%s3 + $0x28] sm:$0xf]
    %v1056 = vld [vmem:[%s3 + $0x2c] sm:$0xf]
    %v1057 = vld [vmem:[%s3 + $0x30] sm:$0xf]
    %v1058 = vld [vmem:[%s3 + $0x34] sm:$0xf]
    %v1059 = vld [vmem:[%s3 + $0x38] sm:$0xf]
    %v1060 = vld [vmem:[%s3 + $0x3c] sm:$0xf]
    %v1101 = vunpack.c.l.b16 %v1005
    %v1102 = vunpack.c.h.b16 %v1005
    %v1103 = vunpack.c.l.b16 %v1006
    %v1104 = vunpack.c.h.b16 %v1006
    %v1105 = vunpack.c.l.b16 %v1007
    %v1106 = vunpack.c.h.b16 %v1007
    %v1107 = vunpack.c.l.b16 %v1008
    %v1108 = vunpack.c.h.b16 %v1008
    %v1109 = vunpack.c.l.b16 %v1009
    %v1110 = vunpack.c.h.b16 %v1009
    %v1111 = vunpack.c.l.b16 %v1010
    %v1112 = vunpack.c.h.b16 %v1010
    %v1113 = vunpack.c.l.b16 %v1011
    %v1114 = vunpack.c.h.b16 %v1011
    %v1115 = vunpack.c.l.b16 %v1012
    %v1116 = vunpack.c.h.b16 %v1012
    %v1117 = vunpack.c.l.b16 %v1013
    %v1118 = vunpack.c.h.b16 %v1013
    %v1119 = vunpack.c.l.b16 %v1014
    %v1120 = vunpack.c.h.b16 %v1014
    %v1121 = vunpack.c.l.b16 %v1015
    %v1122 = vunpack.c.h.b16 %v1015
    %v1123 = vunpack.c.l.b16 %v1016
    %v1124 = vunpack.c.h.b16 %v1016
    %v1125 = vunpack.c.l.b16 %v1017
    %v1126 = vunpack.c.h.b16 %v1017
    %v1127 = vunpack.c.l.b16 %v1018
    %v1128 = vunpack.c.h.b16 %v1018
    %v1129 = vunpack.c.l.b16 %v1019
    %v1130 = vunpack.c.h.b16 %v1019
    %v1131 = vunpack.c.l.b16 %v1020
    %v1132 = vunpack.c.h.b16 %v1020
    %v1133 = vunpack.c.l.b16 %v1021
    %v1134 = vunpack.c.h.b16 %v1021
    %v1135 = vunpack.c.l.b16 %v1022
    %v1136 = vunpack.c.h.b16 %v1022
    %v1137 = vunpack.c.l.b16 %v1023
    %v1138 = vunpack.c.h.b16 %v1023
    %v1139 = vunpack.c.l.b16 %v1024
    %v1140 = vunpack.c.h.b16 %v1024
    %v1141 = vunpack.c.l.b16 %v1025
    %v1142 = vunpack.c.h.b16 %v1025
    %v1143 = vunpack.c.l.b16 %v1026
    %v1144 = vunpack.c.h.b16 %v1026
    %v1145 = vunpack.c.l.b16 %v1027
    %v1146 = vunpack.c.h.b16 %v1027
    %v1147 = vunpack.c.l.b16 %v1028
    %v1148 = vunpack.c.h.b16 %v1028
    %v1149 = vunpack.c.l.b16 %v1029
    %v1150 = vunpack.c.h.b16 %v1029
    %v1151 = vunpack.c.l.b16 %v1030
    %v1152 = vunpack.c.h.b16 %v1030
    %v1153 = vunpack.c.l.b16 %v1031
    %v1154 = vunpack.c.h.b16 %v1031
    %v1155 = vunpack.c.l.b16 %v1032
    %v1156 = vunpack.c.h.b16 %v1032
    %v1157 = vunpack.c.l.b16 %v1033
    %v1158 = vunpack.c.h.b16 %v1033
    %v1159 = vunpack.c.l.b16 %v1034
    %v1160 = vunpack.c.h.b16 %v1034
    %v1161 = vunpack.c.l.b16 %v1035
    %v1162 = vunpack.c.h.b16 %v1035
    %v1163 = vunpack.c.l.b16 %v1036
    %v1164 = vunpack.c.h.b16 %v1036
    %v1165 = vunpack.c.l.b16 %v1037
    %v1166 = vunpack.c.h.b16 %v1037
    %v1167 = vunpack.c.l.b16 %v1038
    %v1168 = vunpack.c.h.b16 %v1038
    %v1169 = vunpack.c.l.b16 %v1039
    %v1170 = vunpack.c.h.b16 %v1039
    %v1171 = vunpack.c.l.b16 %v1040
    %v1172 = vunpack.c.h.b16 %v1040
    %v1173 = vunpack.c.l.b16 %v1041
    %v1174 = vunpack.c.h.b16 %v1041
    %v1175 = vunpack.c.l.b16 %v1042
    %v1176 = vunpack.c.h.b16 %v1042
    %v1177 = vunpack.c.l.b16 %v1043
    %v1178 = vunpack.c.h.b16 %v1043
    %v1179 = vunpack.c.l.b16 %v1044
    %v1180 = vunpack.c.h.b16 %v1044
    %v1181 = vpack.c.b16 %v1103, %v1101
    %v1182 = vpack.c.b16 %v1104, %v1102
    %v1183 = vpack.c.b16 %v1107, %v1105
    %v1184 = vpack.c.b16 %v1108, %v1106
    %v1185 = vpack.c.b16 %v1111, %v1109
    %v1186 = vpack.c.b16 %v1112, %v1110
    %v1187 = vpack.c.b16 %v1115, %v1113
    %v1188 = vpack.c.b16 %v1116, %v1114
    %v1189 = vpack.c.b16 %v1119, %v1117
    %v1190 = vpack.c.b16 %v1120, %v1118
    %v1191 = vpack.c.b16 %v1123, %v1121
    %v1192 = vpack.c.b16 %v1124, %v1122
    %v1193 = vpack.c.b16 %v1127, %v1125
    %v1194 = vpack.c.b16 %v1128, %v1126
    %v1195 = vpack.c.b16 %v1131, %v1129
    %v1196 = vpack.c.b16 %v1132, %v1130
    %v1197 = vpack.c.b16 %v1135, %v1133
    %v1198 = vpack.c.b16 %v1136, %v1134
    %v1199 = vpack.c.b16 %v1139, %v1137
    %v1200 = vpack.c.b16 %v1140, %v1138
    %v1201 = vpack.c.b16 %v1143, %v1141
    %v1202 = vpack.c.b16 %v1144, %v1142
    %v1203 = vpack.c.b16 %v1147, %v1145
    %v1204 = vpack.c.b16 %v1148, %v1146
    %v1205 = vpack.c.b16 %v1151, %v1149
    %v1206 = vpack.c.b16 %v1152, %v1150
    %v1207 = vpack.c.b16 %v1155, %v1153
    %v1208 = vpack.c.b16 %v1156, %v1154
    %v1209 = vpack.c.b16 %v1159, %v1157
    %v1210 = vpack.c.b16 %v1160, %v1158
    %v1211 = vpack.c.b16 %v1163, %v1161
    %v1212 = vpack.c.b16 %v1164, %v1162
    %v1213 = vpack.c.b16 %v1167, %v1165
    %v1214 = vpack.c.b16 %v1168, %v1166
    %v1215 = vpack.c.b16 %v1171, %v1169
    %v1216 = vpack.c.b16 %v1172, %v1170
    %v1217 = vpack.c.b16 %v1175, %v1173
    %v1218 = vpack.c.b16 %v1176, %v1174
    %v1219 = vpack.c.b16 %v1179, %v1177
    %v1220 = vpack.c.b16 %v1180, %v1178
    %vm1241 = vcmask 949248
    %v1243 = vsel %vm1241, %v1182, 0
    %v1246 = vsel %vm1241, %v1184, 0
    %v1249 = vsel %vm1241, %v1186, 0
    %v1252 = vsel %vm1241, %v1188, 0
    %v1255 = vsel %vm1241, %v1190, 0
    %v1258 = vsel %vm1241, %v1192, 0
    %v1261 = vsel %vm1241, %v1194, 0
    %v1264 = vsel %vm1241, %v1196, 0
    %v1267 = vsel %vm1241, %v1198, 0
    %v1270 = vsel %vm1241, %v1200, 0
    %v1273 = vsel %vm1241, %v1202, 0
    %v1276 = vsel %vm1241, %v1204, 0
    %v1279 = vsel %vm1241, %v1206, 0
    %v1282 = vsel %vm1241, %v1208, 0
    %v1285 = vsel %vm1241, %v1210, 0
    %v1288 = vsel %vm1241, %v1212, 0
    %v1291 = vsel %vm1241, %v1214, 0
    %v1294 = vsel %vm1241, %v1216, 0
    %v1297 = vsel %vm1241, %v1218, 0
    %v1300 = vsel %vm1241, %v1220, 0
    %vm1302 = vcmask 1041408
    %v1304 = vsel %vm1302, %v1004, 0
    %1306 = vmatprep.subr.bf16.mxu0 0
    %1307 = vmatpush1.bf16.msra.mxu0 %v989
    %1308 = vmatprep.subr.bf16.mxu0 0
    %1309 = vmatpush1.bf16.msra.mxu0 %v990
    %1310 = vmatprep.subr.bf16.mxu0 0
    %1311 = vmatpush1.bf16.msra.mxu0 %v991
    %1312 = vmatprep.subr.bf16.mxu0 0
    %1313 = vmatpush1.bf16.msra.mxu0 %v992
    %1314 = vmatprep.subr.bf16.mxu0 0
    %1315 = vmatpush1.bf16.msra.mxu0 %v993
    %1316 = vmatprep.subr.bf16.mxu0 0
    %1317 = vmatpush1.bf16.msra.mxu0 %v994
    %1318 = vmatprep.subr.bf16.mxu0 0
    %1319 = vmatpush1.bf16.msra.mxu0 %v995
    %1320 = vmatprep.subr.bf16.mxu0 0
    %1321 = vmatpush1.bf16.msra.mxu0 %v996
    %1322 = vmatprep.subr.bf16.mxu0 0
    %1323 = vmatpush1.bf16.msra.mxu0 %v997
    %1324 = vmatprep.subr.bf16.mxu0 0
    %1325 = vmatpush1.bf16.msra.mxu0 %v998
    %1326 = vmatprep.subr.bf16.mxu0 0
    %1327 = vmatpush1.bf16.msra.mxu0 %v999
    %1328 = vmatprep.subr.bf16.mxu0 0
    %1329 = vmatpush1.bf16.msra.mxu0 %v1000
    %1330 = vmatprep.subr.bf16.mxu0 0
    %1331 = vmatpush1.bf16.msra.mxu0 %v1001
    %1332 = vmatprep.subr.bf16.mxu0 0
    %1333 = vmatpush1.bf16.msra.mxu0 %v1002
    %1334 = vmatprep.subr.bf16.mxu0 0
    %1335 = vmatpush1.bf16.msra.mxu0 %v1003
    %1336 = vmatprep.subr.bf16.mxu0 0
    %1337 = vmatpush1.bf16.msra.mxu0 %v1304
    %1338 = vmatprep.mubr.bf16.mxu0 %v1243
    %1339 = vmatmul.mubr.bf16.gmra.mrb[0].mxu0 %v1181
    %v1340 = vpop.f32.mrb[0].mxu0
    %v1341 = vadd.f32 0.0, %v1340
    %v1342 = vpop.f32.mrb[0].mxu0
    %v1343 = vpop.f32.mrb[0].mxu0
    %v1344 = vadd.f32 0.0, %v1343
    %v1345 = vpop.f32.mrb[0].mxu0
    %1346 = vmatprep.mubr.bf16.mxu0 %v1246
    %1347 = vmatmul.mubr.bf16.gmra.mrb[0].mxu0 %v1183
    %v1348 = vpop.f32.mrb[0].mxu0
    %v1349 = vadd.f32 0.0, %v1348
    %v1350 = vpop.f32.mrb[0].mxu0
    %v1351 = vpop.f32.mrb[0].mxu0
    %v1352 = vadd.f32 0.0, %v1351
    %v1353 = vpop.f32.mrb[0].mxu0
    %1354 = vmatprep.mubr.bf16.mxu0 %v1249
    %1355 = vmatmul.mubr.bf16.gmra.mrb[0].mxu0 %v1185
    %v1356 = vpop.f32.mrb[0].mxu0
    %v1357 = vadd.f32 0.0, %v1356
    %v1358 = vpop.f32.mrb[0].mxu0
    %v1359 = vpop.f32.mrb[0].mxu0
    %v1360 = vadd.f32 0.0, %v1359
    %v1361 = vpop.f32.mrb[0].mxu0
    %1362 = vmatprep.mubr.bf16.mxu0 %v1252
    %1363 = vmatmul.mubr.bf16.gmra.mrb[0].mxu0 %v1187
    %v1364 = vpop.f32.mrb[0].mxu0
    %v1365 = vadd.f32 0.0, %v1364
    %v1366 = vpop.f32.mrb[0].mxu0
    %v1367 = vpop.f32.mrb[0].mxu0
    %v1368 = vadd.f32 0.0, %v1367
    %v1369 = vpop.f32.mrb[0].mxu0
    %1370 = vmatprep.mubr.bf16.mxu0 %v1255
    %1371 = vmatmul.mubr.bf16.gmra.mrb[0].mxu0 %v1189
    %v1372 = vpop.f32.mrb[0].mxu0
    %v1373 = vadd.f32 0.0, %v1372
    %v1374 = vpop.f32.mrb[0].mxu0
    %v1375 = vpop.f32.mrb[0].mxu0
    %v1376 = vadd.f32 0.0, %v1375
    %v1377 = vpop.f32.mrb[0].mxu0
    %1378 = vmatprep.mubr.bf16.mxu0 %v1258
    %1379 = vmatmul.mubr.bf16.gmra.mrb[0].mxu0 %v1191
    %v1380 = vpop.f32.mrb[0].mxu0
    %v1381 = vadd.f32 0.0, %v1380
    %v1382 = vpop.f32.mrb[0].mxu0
    %v1383 = vpop.f32.mrb[0].mxu0
    %v1384 = vadd.f32 0.0, %v1383
    %v1385 = vpop.f32.mrb[0].mxu0
    %1386 = vmatprep.mubr.bf16.mxu0 %v1261
    %1387 = vmatmul.mubr.bf16.gmra.mrb[0].mxu0 %v1193
    %v1388 = vpop.f32.mrb[0].mxu0
    %v1389 = vadd.f32 0.0, %v1388
    %v1390 = vpop.f32.mrb[0].mxu0
    %v1391 = vpop.f32.mrb[0].mxu0
    %v1392 = vadd.f32 0.0, %v1391
    %v1393 = vpop.f32.mrb[0].mxu0
    %1394 = vmatprep.mubr.bf16.mxu0 %v1264
    %1395 = vmatmul.mubr.bf16.gmra.mrb[0].mxu0 %v1195
    %v1396 = vpop.f32.mrb[0].mxu0
    %v1397 = vadd.f32 0.0, %v1396
    %v1398 = vpop.f32.mrb[0].mxu0
    %v1399 = vpop.f32.mrb[0].mxu0
    %v1400 = vadd.f32 0.0, %v1399
    %v1401 = vpop.f32.mrb[0].mxu0
    %1402 = vmatprep.mubr.bf16.mxu0 %v1267
    %1403 = vmatmul.mubr.bf16.gmra.mrb[0].mxu0 %v1197
    %v1404 = vpop.f32.mrb[0].mxu0
    %v1405 = vadd.f32 0.0, %v1404
    %v1406 = vpop.f32.mrb[0].mxu0
    %v1407 = vpop.f32.mrb[0].mxu0
    %v1408 = vadd.f32 0.0, %v1407
    %v1409 = vpop.f32.mrb[0].mxu0
    %1410 = vmatprep.mubr.bf16.mxu0 %v1270
    %1411 = vmatmul.mubr.bf16.gmra.mrb[0].mxu0 %v1199
    %v1412 = vpop.f32.mrb[0].mxu0
    %v1413 = vadd.f32 0.0, %v1412
    %v1414 = vpop.f32.mrb[0].mxu0
    %v1415 = vpop.f32.mrb[0].mxu0
    %v1416 = vadd.f32 0.0, %v1415
    %v1417 = vpop.f32.mrb[0].mxu0
    %1418 = vmatprep.mubr.bf16.mxu0 %v1273
    %1419 = vmatmul.mubr.bf16.gmra.mrb[0].mxu0 %v1201
    %v1420 = vpop.f32.mrb[0].mxu0
    %v1421 = vadd.f32 0.0, %v1420
    %v1422 = vpop.f32.mrb[0].mxu0
    %v1423 = vpop.f32.mrb[0].mxu0
    %v1424 = vadd.f32 0.0, %v1423
    %v1425 = vpop.f32.mrb[0].mxu0
    %1426 = vmatprep.mubr.bf16.mxu0 %v1276
    %1427 = vmatmul.mubr.bf16.gmra.mrb[0].mxu0 %v1203
    %v1428 = vpop.f32.mrb[0].mxu0
    %v1429 = vadd.f32 0.0, %v1428
    %v1430 = vpop.f32.mrb[0].mxu0
    %v1431 = vpop.f32.mrb[0].mxu0
    %v1432 = vadd.f32 0.0, %v1431
    %v1433 = vpop.f32.mrb[0].mxu0
    %1434 = vmatprep.mubr.bf16.mxu0 %v1279
    %1435 = vmatmul.mubr.bf16.gmra.mrb[0].mxu0 %v1205
    %v1436 = vpop.f32.mrb[0].mxu0
    %v1437 = vadd.f32 0.0, %v1436
    %v1438 = vpop.f32.mrb[0].mxu0
    %v1439 = vpop.f32.mrb[0].mxu0
    %v1440 = vadd.f32 0.0, %v1439
    %v1441 = vpop.f32.mrb[0].mxu0
    %1442 = vmatprep.mubr.bf16.mxu0 %v1282
    %1443 = vmatmul.mubr.bf16.gmra.mrb[0].mxu0 %v1207
    %v1444 = vpop.f32.mrb[0].mxu0
    %v1445 = vadd.f32 0.0, %v1444
    %v1446 = vpop.f32.mrb[0].mxu0
    %v1447 = vpop.f32.mrb[0].mxu0
    %v1448 = vadd.f32 0.0, %v1447
    %v1449 = vpop.f32.mrb[0].mxu0
    %1450 = vmatprep.mubr.bf16.mxu0 %v1285
    %1451 = vmatmul.mubr.bf16.gmra.mrb[0].mxu0 %v1209
    %v1452 = vpop.f32.mrb[0].mxu0
    %v1453 = vadd.f32 0.0, %v1452
    %v1454 = vpop.f32.mrb[0].mxu0
    %v1455 = vpop.f32.mrb[0].mxu0
    %v1456 = vadd.f32 0.0, %v1455
    %v1457 = vpop.f32.mrb[0].mxu0
    %1458 = vmatprep.mubr.bf16.mxu0 %v1288
    %1459 = vmatmul.mubr.bf16.gmra.mrb[0].mxu0 %v1211
    %v1460 = vpop.f32.mrb[0].mxu0
    %v1461 = vadd.f32 0.0, %v1460
    %v1462 = vpop.f32.mrb[0].mxu0
    %v1463 = vpop.f32.mrb[0].mxu0
    %v1464 = vadd.f32 0.0, %v1463
    %v1465 = vpop.f32.mrb[0].mxu0
    %1466 = vmatprep.mubr.bf16.mxu0 %v1291
    %1467 = vmatmul.mubr.bf16.gmra.mrb[0].mxu0 %v1213
    %v1468 = vpop.f32.mrb[0].mxu0
    %v1469 = vadd.f32 0.0, %v1468
    %v1470 = vpop.f32.mrb[0].mxu0
    %v1471 = vpop.f32.mrb[0].mxu0
    %v1472 = vadd.f32 0.0, %v1471
    %v1473 = vpop.f32.mrb[0].mxu0
    %1474 = vmatprep.mubr.bf16.mxu0 %v1294
    %1475 = vmatmul.mubr.bf16.gmra.mrb[0].mxu0 %v1215
    %v1476 = vpop.f32.mrb[0].mxu0
    %v1477 = vadd.f32 0.0, %v1476
    %v1478 = vpop.f32.mrb[0].mxu0
    %v1479 = vpop.f32.mrb[0].mxu0
    %v1480 = vadd.f32 0.0, %v1479
    %v1481 = vpop.f32.mrb[0].mxu0
    %1482 = vmatprep.mubr.bf16.mxu0 %v1297
    %1483 = vmatmul.mubr.bf16.gmra.mrb[0].mxu0 %v1217
    %v1484 = vpop.f32.mrb[0].mxu0
    %v1485 = vadd.f32 0.0, %v1484
    %v1486 = vpop.f32.mrb[0].mxu0
    %v1487 = vpop.f32.mrb[0].mxu0
    %v1488 = vadd.f32 0.0, %v1487
    %v1489 = vpop.f32.mrb[0].mxu0
    %1490 = vmatprep.mubr.bf16.mxu0 %v1300
    %1491 = vmatmul.mubr.bf16.gmra.mrb[0].mxu0 %v1219
    %v1492 = vpop.f32.mrb[0].mxu0
    %v1493 = vadd.f32 0.0, %v1492
    %v1494 = vpop.f32.mrb[0].mxu0
    %v1495 = vpop.f32.mrb[0].mxu0
    %v1496 = vadd.f32 0.0, %v1495
    %v1497 = vpop.f32.mrb[0].mxu0
    %1498 = vdwg.mxu0
    %v1499 = vpack.c.bf16 %v1344, %v1341
    %v1500 = vpack.c.bf16 %v1352, %v1349
    %v1501 = vpack.c.bf16 %v1360, %v1357
    %v1502 = vpack.c.bf16 %v1368, %v1365
    %v1503 = vpack.c.bf16 %v1376, %v1373
    %v1504 = vpack.c.bf16 %v1384, %v1381
    %v1505 = vpack.c.bf16 %v1392, %v1389
    %v1506 = vpack.c.bf16 %v1400, %v1397
    %v1507 = vpack.c.bf16 %v1408, %v1405
    %v1508 = vpack.c.bf16 %v1416, %v1413
    %v1509 = vpack.c.bf16 %v1424, %v1421
    %v1510 = vpack.c.bf16 %v1432, %v1429
    %v1511 = vpack.c.bf16 %v1440, %v1437
    %v1512 = vpack.c.bf16 %v1448, %v1445
    %v1513 = vpack.c.bf16 %v1456, %v1453
    %v1514 = vpack.c.bf16 %v1464, %v1461
    %v1515 = vpack.c.bf16 %v1472, %v1469
    %v1516 = vpack.c.bf16 %v1480, %v1477
    %v1517 = vpack.c.bf16 %v1488, %v1485
    %v1518 = vpack.c.bf16 %v1496, %v1493
    %v1522 = vunpack.c.l.b16 %v1499
    %v1523 = vunpack.c.h.b16 %v1499
    %v1524 = vunpack.c.l.b16 %v1500
    %v1525 = vunpack.c.h.b16 %v1500
    %v1526 = vunpack.c.l.b16 %v1501
    %v1527 = vpack.c.b16 %v1522, %v1522
    %v1528 = vpack.c.b16 %v1523, %v1523
    %v1529 = vpack.c.b16 %v1524, %v1524
    %v1530 = vpack.c.b16 %v1525, %v1525
    %v1531 = vpack.c.b16 %v1526, %v1526
    %1537 = vst.msk [vmem:[#allocation4] sm:$0xf] %vm650, %v1527
    %1538 = vst.msk [vmem:[#allocation4 + $0x4] sm:$0xf] %vm650, %v1528
    %1539 = vst.msk [vmem:[#allocation4 + $0x8] sm:$0xf] %vm650, %v1529
    %1540 = vst.msk [vmem:[#allocation4 + $0xc] sm:$0xf] %vm650, %v1530
    %1541 = vst.msk [vmem:[#allocation4 + $0x10] sm:$0xf] %vm650, %v1531
    %v1544 = vunpack.c.h.b16 %v1501
    %v1545 = vunpack.c.l.b16 %v1502
    %v1546 = vunpack.c.h.b16 %v1502
    %v1547 = vunpack.c.l.b16 %v1503
    %v1548 = vunpack.c.h.b16 %v1503
    %v1549 = vpack.c.b16 %v1544, %v1544
    %v1550 = vpack.c.b16 %v1545, %v1545
    %v1551 = vpack.c.b16 %v1546, %v1546
    %v1552 = vpack.c.b16 %v1547, %v1547
    %v1553 = vpack.c.b16 %v1548, %v1548
    %1554 = vrot.lane.b32.xlu0 %v1549, 16
    %v1555 = vpop.permute.xlu0 %1554
    %1556 = vrot.lane.b32.xlu0 %v1550, 16
    %v1557 = vpop.permute.xlu0 %1556
    %1558 = vrot.lane.b32.xlu0 %v1551, 16
    %v1559 = vpop.permute.xlu0 %1558
    %1560 = vrot.lane.b32.xlu0 %v1552, 16
    %v1561 = vpop.permute.xlu0 %1560
    %1562 = vrot.lane.b32.xlu0 %v1553, 16
    %v1563 = vpop.permute.xlu0 %1562
    %vm1569 = vcmask 257152
    %1570 = vst.msk [vmem:[#allocation4] sm:$0xf] %vm1569, %v1555
    %1571 = vst.msk [vmem:[#allocation4 + $0x4] sm:$0xf] %vm1569, %v1557
    %1572 = vst.msk [vmem:[#allocation4 + $0x8] sm:$0xf] %vm1569, %v1559
    %1573 = vst.msk [vmem:[#allocation4 + $0xc] sm:$0xf] %vm1569, %v1561
    %1574 = vst.msk [vmem:[#allocation4 + $0x10] sm:$0xf] %vm1569, %v1563
    %v1578 = vunpack.c.l.b16 %v1504
    %v1579 = vunpack.c.h.b16 %v1504
    %v1580 = vunpack.c.l.b16 %v1505
    %v1581 = vunpack.c.h.b16 %v1505
    %v1582 = vunpack.c.l.b16 %v1506
    %v1583 = vpack.c.b16 %v1578, %v1578
    %v1584 = vpack.c.b16 %v1579, %v1579
    %v1585 = vpack.c.b16 %v1580, %v1580
    %v1586 = vpack.c.b16 %v1581, %v1581
    %v1587 = vpack.c.b16 %v1582, %v1582
    %1588 = vrot.lane.b32.xlu0 %v1583, 32
    %v1589 = vpop.permute.xlu0 %1588
    %1590 = vrot.lane.b32.xlu0 %v1584, 32
    %v1591 = vpop.permute.xlu0 %1590
    %1592 = vrot.lane.b32.xlu0 %v1585, 32
    %v1593 = vpop.permute.xlu0 %1592
    %1594 = vrot.lane.b32.xlu0 %v1586, 32
    %v1595 = vpop.permute.xlu0 %1594
    %1596 = vrot.lane.b32.xlu0 %v1587, 32
    %v1597 = vpop.permute.xlu0 %1596
    %vm1603 = vcmask 388352
    %1604 = vst.msk [vmem:[#allocation4] sm:$0xf] %vm1603, %v1589
    %1605 = vst.msk [vmem:[#allocation4 + $0x4] sm:$0xf] %vm1603, %v1591
    %1606 = vst.msk [vmem:[#allocation4 + $0x8] sm:$0xf] %vm1603, %v1593
    %1607 = vst.msk [vmem:[#allocation4 + $0xc] sm:$0xf] %vm1603, %v1595
    %1608 = vst.msk [vmem:[#allocation4 + $0x10] sm:$0xf] %vm1603, %v1597
    %v1611 = vunpack.c.h.b16 %v1506
    %v1612 = vunpack.c.l.b16 %v1507
    %v1613 = vunpack.c.h.b16 %v1507
    %v1614 = vunpack.c.l.b16 %v1508
    %v1615 = vunpack.c.h.b16 %v1508
    %v1616 = vpack.c.b16 %v1611, %v1611
    %v1617 = vpack.c.b16 %v1612, %v1612
    %v1618 = vpack.c.b16 %v1613, %v1613
    %v1619 = vpack.c.b16 %v1614, %v1614
    %v1620 = vpack.c.b16 %v1615, %v1615
    %1621 = vrot.lane.b32.xlu0 %v1616, 48
    %v1622 = vpop.permute.xlu0 %1621
    %1623 = vrot.lane.b32.xlu0 %v1617, 48
    %v1624 = vpop.permute.xlu0 %1623
    %1625 = vrot.lane.b32.xlu0 %v1618, 48
    %v1626 = vpop.permute.xlu0 %1625
    %1627 = vrot.lane.b32.xlu0 %v1619, 48
    %v1628 = vpop.permute.xlu0 %1627
    %1629 = vrot.lane.b32.xlu0 %v1620, 48
    %v1630 = vpop.permute.xlu0 %1629
    %vm1636 = vcmask 519552
    %1637 = vst.msk [vmem:[#allocation4] sm:$0xf] %vm1636, %v1622
    %1638 = vst.msk [vmem:[#allocation4 + $0x4] sm:$0xf] %vm1636, %v1624
    %1639 = vst.msk [vmem:[#allocation4 + $0x8] sm:$0xf] %vm1636, %v1626
    %1640 = vst.msk [vmem:[#allocation4 + $0xc] sm:$0xf] %vm1636, %v1628
    %1641 = vst.msk [vmem:[#allocation4 + $0x10] sm:$0xf] %vm1636, %v1630
    %v1645 = vunpack.c.l.b16 %v1509
    %v1646 = vunpack.c.h.b16 %v1509
    %v1647 = vunpack.c.l.b16 %v1510
    %v1648 = vunpack.c.h.b16 %v1510
    %v1649 = vunpack.c.l.b16 %v1511
    %v1650 = vpack.c.b16 %v1645, %v1645
    %v1651 = vpack.c.b16 %v1646, %v1646
    %v1652 = vpack.c.b16 %v1647, %v1647
    %v1653 = vpack.c.b16 %v1648, %v1648
    %v1654 = vpack.c.b16 %v1649, %v1649
    %1655 = vrot.lane.b32.xlu0 %v1650, 64
    %v1656 = vpop.permute.xlu0 %1655
    %1657 = vrot.lane.b32.xlu0 %v1651, 64
    %v1658 = vpop.permute.xlu0 %1657
    %1659 = vrot.lane.b32.xlu0 %v1652, 64
    %v1660 = vpop.permute.xlu0 %1659
    %1661 = vrot.lane.b32.xlu0 %v1653, 64
    %v1662 = vpop.permute.xlu0 %1661
    %1663 = vrot.lane.b32.xlu0 %v1654, 64
    %v1664 = vpop.permute.xlu0 %1663
    %vm1670 = vcmask 650752
    %1671 = vst.msk [vmem:[#allocation4] sm:$0xf] %vm1670, %v1656
    %1672 = vst.msk [vmem:[#allocation4 + $0x4] sm:$0xf] %vm1670, %v1658
    %1673 = vst.msk [vmem:[#allocation4 + $0x8] sm:$0xf] %vm1670, %v1660
    %1674 = vst.msk [vmem:[#allocation4 + $0xc] sm:$0xf] %vm1670, %v1662
    %1675 = vst.msk [vmem:[#allocation4 + $0x10] sm:$0xf] %vm1670, %v1664
    %v1678 = vunpack.c.h.b16 %v1511
    %v1679 = vunpack.c.l.b16 %v1512
    %v1680 = vunpack.c.h.b16 %v1512
    %v1681 = vunpack.c.l.b16 %v1513
    %v1682 = vunpack.c.h.b16 %v1513
    %v1683 = vpack.c.b16 %v1678, %v1678
    %v1684 = vpack.c.b16 %v1679, %v1679
    %v1685 = vpack.c.b16 %v1680, %v1680
    %v1686 = vpack.c.b16 %v1681, %v1681
    %v1687 = vpack.c.b16 %v1682, %v1682
    %1688 = vrot.lane.b32.xlu0 %v1683, 80
    %v1689 = vpop.permute.xlu0 %1688
    %1690 = vrot.lane.b32.xlu0 %v1684, 80
    %v1691 = vpop.permute.xlu0 %1690
    %1692 = vrot.lane.b32.xlu0 %v1685, 80
    %v1693 = vpop.permute.xlu0 %1692
    %1694 = vrot.lane.b32.xlu0 %v1686, 80
    %v1695 = vpop.permute.xlu0 %1694
    %1696 = vrot.lane.b32.xlu0 %v1687, 80
    %v1697 = vpop.permute.xlu0 %1696
    %vm1703 = vcmask 781952
    %1704 = vst.msk [vmem:[#allocation4] sm:$0xf] %vm1703, %v1689
    %1705 = vst.msk [vmem:[#allocation4 + $0x4] sm:$0xf] %vm1703, %v1691
    %1706 = vst.msk [vmem:[#allocation4 + $0x8] sm:$0xf] %vm1703, %v1693
    %1707 = vst.msk [vmem:[#allocation4 + $0xc] sm:$0xf] %vm1703, %v1695
    %1708 = vst.msk [vmem:[#allocation4 + $0x10] sm:$0xf] %vm1703, %v1697
    %v1712 = vunpack.c.l.b16 %v1514
    %v1713 = vunpack.c.h.b16 %v1514
    %v1714 = vunpack.c.l.b16 %v1515
    %v1715 = vunpack.c.h.b16 %v1515
    %v1716 = vunpack.c.l.b16 %v1516
    %v1717 = vpack.c.b16 %v1712, %v1712
    %v1718 = vpack.c.b16 %v1713, %v1713
    %v1719 = vpack.c.b16 %v1714, %v1714
    %v1720 = vpack.c.b16 %v1715, %v1715
    %v1721 = vpack.c.b16 %v1716, %v1716
    %1722 = vrot.lane.b32.xlu0 %v1717, 96
    %v1723 = vpop.permute.xlu0 %1722
    %1724 = vrot.lane.b32.xlu0 %v1718, 96
    %v1725 = vpop.permute.xlu0 %1724
    %1726 = vrot.lane.b32.xlu0 %v1719, 96
    %v1727 = vpop.permute.xlu0 %1726
    %1728 = vrot.lane.b32.xlu0 %v1720, 96
    %v1729 = vpop.permute.xlu0 %1728
    %1730 = vrot.lane.b32.xlu0 %v1721, 96
    %v1731 = vpop.permute.xlu0 %1730
    %vm1737 = vcmask 913152
    %1738 = vst.msk [vmem:[#allocation4] sm:$0xf] %vm1737, %v1723
    %1739 = vst.msk [vmem:[#allocation4 + $0x4] sm:$0xf] %vm1737, %v1725
    %1740 = vst.msk [vmem:[#allocation4 + $0x8] sm:$0xf] %vm1737, %v1727
    %1741 = vst.msk [vmem:[#allocation4 + $0xc] sm:$0xf] %vm1737, %v1729
    %1742 = vst.msk [vmem:[#allocation4 + $0x10] sm:$0xf] %vm1737, %v1731
    %v1745 = vunpack.c.h.b16 %v1516
    %v1746 = vunpack.c.l.b16 %v1517
    %v1747 = vunpack.c.h.b16 %v1517
    %v1748 = vunpack.c.l.b16 %v1518
    %v1749 = vunpack.c.h.b16 %v1518
    %v1750 = vpack.c.b16 %v1745, %v1745
    %v1751 = vpack.c.b16 %v1746, %v1746
    %v1752 = vpack.c.b16 %v1747, %v1747
    %v1753 = vpack.c.b16 %v1748, %v1748
    %v1754 = vpack.c.b16 %v1749, %v1749
    %1755 = vrot.lane.b32.xlu0 %v1750, 112
    %v1756 = vpop.permute.xlu0 %1755
    %1757 = vrot.lane.b32.xlu0 %v1751, 112
    %v1758 = vpop.permute.xlu0 %1757
    %1759 = vrot.lane.b32.xlu0 %v1752, 112
    %v1760 = vpop.permute.xlu0 %1759
    %1761 = vrot.lane.b32.xlu0 %v1753, 112
    %v1762 = vpop.permute.xlu0 %1761
    %1763 = vrot.lane.b32.xlu0 %v1754, 112
    %v1764 = vpop.permute.xlu0 %1763
    %vm1770 = vcmask 1044352
    %1771 = vst.msk [vmem:[#allocation4] sm:$0xf] %vm1770, %v1756
    %1772 = vst.msk [vmem:[#allocation4 + $0x4] sm:$0xf] %vm1770, %v1758
    %1773 = vst.msk [vmem:[#allocation4 + $0x8] sm:$0xf] %vm1770, %v1760
    %1774 = vst.msk [vmem:[#allocation4 + $0xc] sm:$0xf] %vm1770, %v1762
    %1775 = vst.msk [vmem:[#allocation4 + $0x10] sm:$0xf] %vm1770, %v1764
    %v1776 = vld [vmem:[#allocation4] sm:$0xf]
    %v1777 = vld [vmem:[#allocation4 + $0x4] sm:$0xf]
    %v1778 = vld [vmem:[#allocation4 + $0x8] sm:$0xf]
    %v1779 = vld [vmem:[#allocation4 + $0xc] sm:$0xf]
    %v1780 = vld [vmem:[#allocation4 + $0x10] sm:$0xf]
    %v1786 = vunpack.c.l.b16 %v1776
    %v1787 = vunpack.c.l.b16 %v1777
    %v1788 = vunpack.c.l.b16 %v1778
    %v1789 = vunpack.c.l.b16 %v1779
    %v1790 = vunpack.c.l.b16 %v1780
    %v1791 = vpack.c.b16 %v1787, %v1786
    %v1792 = vpack.c.b16 %v1789, %v1788
    %v1793 = vpack.c.b16 %v1790, %v1790
    %v1813 = vunpack.c.l.b16 %v1045
    %v1814 = vunpack.c.l.b16 %v1046
    %v1815 = vunpack.c.l.b16 %v1047
    %v1816 = vunpack.c.l.b16 %v1048
    %v1817 = vunpack.c.l.b16 %v1049
    %v1818 = vunpack.c.l.b16 %v1050
    %v1819 = vunpack.c.l.b16 %v1051
    %v1820 = vunpack.c.l.b16 %v1052
    %v1821 = vunpack.c.l.b16 %v1053
    %v1822 = vunpack.c.l.b16 %v1054
    %v1823 = vunpack.c.l.b16 %v1055
    %v1824 = vunpack.c.l.b16 %v1056
    %v1825 = vunpack.c.l.b16 %v1057
    %v1826 = vunpack.c.l.b16 %v1058
    %v1827 = vunpack.c.l.b16 %v1059
    %v1828 = vunpack.c.l.b16 %v1060
    %v1829 = vpack.c.b16 %v1814, %v1813
    %v1830 = vpack.c.b16 %v1816, %v1815
    %v1831 = vpack.c.b16 %v1818, %v1817
    %v1832 = vpack.c.b16 %v1820, %v1819
    %v1833 = vpack.c.b16 %v1822, %v1821
    %v1834 = vpack.c.b16 %v1824, %v1823
    %v1835 = vpack.c.b16 %v1826, %v1825
    %v1836 = vpack.c.b16 %v1828, %v1827
    %1845 = vmatprep.subr.bf16.mxu0 0
    %1846 = vmatpush1.bf16.msra.mxu0 %v1829
    %1847 = vmatprep.subr.bf16.mxu0 0
    %1848 = vmatpush1.bf16.msra.mxu0 %v1830
    %1849 = vmatprep.subr.bf16.mxu0 0
    %1850 = vmatpush1.bf16.msra.mxu0 %v1831
    %1851 = vmatprep.subr.bf16.mxu0 0
    %1852 = vmatpush1.bf16.msra.mxu0 %v1832
    %1853 = vmatprep.subr.bf16.mxu0 0
    %1854 = vmatpush1.bf16.msra.mxu0 %v1833
    %1855 = vmatprep.subr.bf16.mxu0 0
    %1856 = vmatpush1.bf16.msra.mxu0 %v1834
    %1857 = vmatprep.subr.bf16.mxu0 0
    %1858 = vmatpush1.bf16.msra.mxu0 %v1835
    %1859 = vmatprep.subr.bf16.mxu0 0
    %1860 = vmatpush1.bf16.msra.mxu0 %v1836
    %1861 = vmatprep.subr.bf16.mxu0 0
    %1862 = vmatpush1.bf16.msra.mxu0 0
    %1863 = vmatprep.subr.bf16.mxu0 0
    %1864 = vmatpush1.bf16.msra.mxu0 0
    %1865 = vmatprep.subr.bf16.mxu0 0
    %1866 = vmatpush1.bf16.msra.mxu0 0
    %1867 = vmatprep.subr.bf16.mxu0 0
    %1868 = vmatpush1.bf16.msra.mxu0 0
    %1869 = vmatprep.subr.bf16.mxu0 0
    %1870 = vmatpush1.bf16.msra.mxu0 0
    %1871 = vmatprep.subr.bf16.mxu0 0
    %1872 = vmatpush1.bf16.msra.mxu0 0
    %1873 = vmatprep.subr.bf16.mxu0 0
    %1874 = vmatpush1.bf16.msra.mxu0 0
    %1875 = vmatprep.subr.bf16.mxu0 0
    %1876 = vmatpush1.bf16.msra.mxu0 0
    %1877 = vmatprep.mubr.bf16.mxu0 0
    %1878 = vmatmul.mubr.bf16.gmra.mrb[0].mxu0 %v1791
    %v1879 = vpop.f32.mrb[0].mxu0
    %v1880 = vadd.f32 0.0, %v1879
    %v1881 = vpop.f32.mrb[0].mxu0
    %v1882 = vpop.f32.mrb[0].mxu0
    %v1883 = vadd.f32 0.0, %v1882
    %v1884 = vpop.f32.mrb[0].mxu0
    %1885 = vmatprep.mubr.bf16.mxu0 0
    %1886 = vmatmul.mubr.bf16.gmra.mrb[0].mxu0 %v1792
    %v1887 = vpop.f32.mrb[0].mxu0
    %v1888 = vadd.f32 0.0, %v1887
    %v1889 = vpop.f32.mrb[0].mxu0
    %v1890 = vpop.f32.mrb[0].mxu0
    %v1891 = vadd.f32 0.0, %v1890
    %v1892 = vpop.f32.mrb[0].mxu0
    %1893 = vmatprep.mubr.bf16.mxu0 0
    %1894 = vmatmul.mubr.bf16.gmra.mrb[0].mxu0 %v1793
    %v1895 = vpop.f32.mrb[0].mxu0
    %v1896 = vadd.f32 0.0, %v1895
    %v1897 = vpop.f32.mrb[0].mxu0
    %v1898 = vpop.f32.mrb[0].mxu0
    %v1899 = vpop.f32.mrb[0].mxu0
    %1900 = vdwg.mxu0
    %vm1901 = vcmask 523264
    %v1902 = vsel %vm1901, %v1880, 0.0
    %v1903 = vsel %vm1901, %v1883, 0.0
    %v1904 = vadd.f32 %v1902, %v1903
    %v1905 = vsel %vm1901, %v1888, 0.0
    %v1906 = vadd.f32 %v1904, %v1905
    %v1907 = vsel %vm1901, %v1891, 0.0
    %v1908 = vadd.f32 %v1906, %v1907
    %v1909 = vsel %vm1901, %v1896, 0.0
    %v1910 = vadd.f32 %v1908, %v1909
    %v1911 = vrot.slane %v1910, 4
    %v1912 = vadd.f32 %v1910, %v1911
    %v1913 = vrot.slane %v1912, 2
    %v1914 = vadd.f32 %v1912, %v1913
    %v1915 = vrot.slane %v1914, 1
    %v1916 = vadd.f32 %v1914, %v1915
    %v1917 = vmul.f32 %v1880, %v1880
    %v1918 = vmul.f32 %v1883, %v1883
    %v1919 = vmul.f32 %v1888, %v1888
    %v1920 = vmul.f32 %v1891, %v1891
    %v1921 = vmul.f32 %v1896, %v1896
    %v1922 = vsel %vm1901, %v1917, 0.0
    %v1923 = vsel %vm1901, %v1918, 0.0
    %v1924 = vadd.f32 %v1922, %v1923
    %v1925 = vsel %vm1901, %v1919, 0.0
    %v1926 = vadd.f32 %v1924, %v1925
    %v1927 = vsel %vm1901, %v1920, 0.0
    %v1928 = vadd.f32 %v1926, %v1927
    %v1929 = vsel %vm1901, %v1921, 0.0
    %v1930 = vadd.f32 %v1928, %v1929
    %v1931 = vrot.slane %v1930, 4
    %v1932 = vadd.f32 %v1930, %v1931
    %v1933 = vrot.slane %v1932, 2
    %v1934 = vadd.f32 %v1932, %v1933
    %v1935 = vrot.slane %v1934, 1
    %v1936 = vadd.f32 %v1934, %v1935
    %v1937 = vmul.f32 %v1916, 0.025
    %v1938 = vmul.f32 %v1936, 0.025
    %v1939 = vmul.f32 %v1937, %v1937
    %v1940 = vsub.f32 %v1938, %v1939
    %v1941 = vmax.f32 %v1940, 0.0
    %v1942 = vsub.f32 %v1880, %v1937
    %v1943 = vsub.f32 %v1883, %v1937
    %v1944 = vsub.f32 %v1888, %v1937
    %v1945 = vsub.f32 %v1891, %v1937
    %v1946 = vsub.f32 %v1896, %v1937
    %v1947 = vadd.f32 %v1941, 1e-05
    %v1948 = vrsqrt.pop %v1947
    %v1949 = vmul.f32 %v1942, %v1948
    %v1950 = vmul.f32 %v1943, %v1948
    %v1951 = vmul.f32 %v1944, %v1948
    %v1952 = vmul.f32 %v1945, %v1948
    %v1953 = vmul.f32 %v1946, %v1948
    %v1954 = vlaneseq
    %v1955 = vshrl.u32 %v1954, 7
    %v1956 = vsub.s32 0, %v1955
    %v1957 = vrot.slane %v263, %v1956
    %v1958 = vmul.f32 %v1949, %v1957
    %v1959 = vmul.f32 %v1950, %v1957
    %v1960 = vmul.f32 %v1951, %v1957
    %v1961 = vmul.f32 %v1952, %v1957
    %v1962 = vmul.f32 %v1953, %v1957
    %v1963 = vlaneseq
    %v1964 = vshrl.u32 %v1963, 7
    %v1965 = vsub.s32 0, %v1964
    %v1966 = vrot.slane %v264, %v1965
    %v1967 = vadd.f32 %v1958, %v1966
    %v1968 = vadd.f32 %v1959, %v1966
    %v1969 = vadd.f32 %v1960, %v1966
    %v1970 = vadd.f32 %v1961, %v1966
    %v1971 = vadd.f32 %v1962, %v1966
    %vm1972 = vcmp.ge.f32.partialorder %v1967, 0.0
    %vm1973 = vcmp.ge.f32.partialorder %v1968, 0.0
    %vm1974 = vcmp.ge.f32.partialorder %v1969, 0.0
    %vm1975 = vcmp.ge.f32.partialorder %v1970, 0.0
    %vm1976 = vcmp.ge.f32.partialorder %v1971, 0.0
    %v1977 = vmul.f32 %v1967, 0.2
    %v1978 = vmul.f32 %v1968, 0.2
    %v1979 = vmul.f32 %v1969, 0.2
    %v1980 = vmul.f32 %v1970, 0.2
    %v1981 = vmul.f32 %v1971, 0.2
    %v1982 = vsel %vm1972, %v1967, %v1977
    %v1983 = vsel %vm1973, %v1968, %v1978
    %v1984 = vsel %vm1974, %v1969, %v1979
    %v1985 = vsel %vm1975, %v1970, %v1980
    %v1986 = vsel %vm1976, %v1971, %v1981
    %v1987 = vpack.c.bf16 %v1983, %v1982
    %v1988 = vpack.c.bf16 %v1985, %v1984
    %v1989 = vpack.c.bf16 %v1986, %v1986
    %s1990 = smul.u32 4, 12
    %s1991 = smul.u32 %s1990, 1
    %s1992 = sshll.u32 %s1991, 4
    %1993 = dma.done [#allocation7], %s1992
    %s1994 = smul.u32 4, 128
    %s1995 = smul.u32 %s1994, 1
    %s1996 = sshll.u32 %s1995, 4
    %1997 = dma.done %s90, %s1996
    %v1998 = vld [vmem:[#allocation2] sm:$0xff]
    %v1999 = vld [vmem:[#allocation2 + $0x8] sm:$0xff]
    %v2000 = vld [vmem:[#allocation2 + $0x10] sm:$0xff]
    %v2001 = vld [vmem:[#allocation2 + $0x18] sm:$0xff]
    %v2002 = vld [vmem:[#allocation3] sm:$0xff]
    %v2003 = vld [vmem:[#allocation3 + $0x8] sm:$0xff]
    %v2004 = vld [vmem:[#allocation3 + $0x10] sm:$0xff]
    %v2005 = vld [vmem:[#allocation3 + $0x18] sm:$0xff]
    %v2006 = vld [vmem:[#allocation3 + $0x20] sm:$0xff]
    %v2007 = vld [vmem:[#allocation3 + $0x28] sm:$0xff]
    %v2008 = vld [vmem:[#allocation3 + $0x30] sm:$0xff]
    %v2009 = vld [vmem:[#allocation3 + $0x38] sm:$0xff]
    %v2010 = vld [vmem:[#allocation3 + $0x40] sm:$0xff]
    %v2011 = vld [vmem:[#allocation3 + $0x48] sm:$0xff]
    %v2012 = vld [vmem:[#allocation3 + $0x50] sm:$0xff]
    %v2013 = vld [vmem:[#allocation3 + $0x58] sm:$0xff]
    %v2014 = vld [vmem:[#allocation3 + $0x60] sm:$0xff]
    %v2015 = vld [vmem:[#allocation3 + $0x68] sm:$0xff]
    %v2016 = vld [vmem:[#allocation3 + $0x70] sm:$0xff]
    %v2017 = vld [vmem:[#allocation3 + $0x78] sm:$0xff]
    %v2018 = vld [vmem:[#allocation3 + $0x80] sm:$0xff]
    %v2019 = vld [vmem:[#allocation3 + $0x88] sm:$0xff]
    %v2020 = vld [vmem:[#allocation3 + $0x90] sm:$0xff]
    %v2021 = vld [vmem:[#allocation3 + $0x98] sm:$0xff]
    %v2022 = vld [vmem:[#allocation3 + $0xa0] sm:$0xff]
    %v2023 = vld [vmem:[#allocation3 + $0xa8] sm:$0xff]
    %v2024 = vld [vmem:[#allocation3 + $0xb0] sm:$0xff]
    %v2025 = vld [vmem:[#allocation3 + $0xb8] sm:$0xff]
    %v2026 = vld [vmem:[#allocation3 + $0xc0] sm:$0xff]
    %v2027 = vld [vmem:[#allocation3 + $0xc8] sm:$0xff]
    %v2028 = vld [vmem:[#allocation3 + $0xd0] sm:$0xff]
    %v2029 = vld [vmem:[#allocation3 + $0xd8] sm:$0xff]
    %v2030 = vld [vmem:[#allocation3 + $0xe0] sm:$0xff]
    %v2031 = vld [vmem:[#allocation3 + $0xe8] sm:$0xff]
    %v2032 = vld [vmem:[#allocation3 + $0xf0] sm:$0xff]
    %v2033 = vld [vmem:[#allocation3 + $0xf8] sm:$0xff]
    %vm2034 = vcmask 326656
    %v2036 = vsel %vm2034, %v1998, 0
    %v2039 = vsel %vm2034, %v1999, 0
    %v2042 = vsel %vm2034, %v2000, 0
    %v2045 = vsel %vm2034, %v2001, 0
    %v2048 = vsel %vm426, %v1989, 0
    %2050 = vmatprep.subr.bf16.mxu0 0
    %2051 = vmatpush1.bf16.msra.mxu0 %v1987
    %2052 = vmatprep.subr.bf16.mxu0 0
    %2053 = vmatpush1.bf16.msra.mxu0 %v1988
    %2054 = vmatprep.subr.bf16.mxu0 0
    %2055 = vmatpush1.bf16.msra.mxu0 %v2048
    %2056 = vmatprep.subr.bf16.mxu0 0
    %2057 = vmatpush1.bf16.msra.mxu0 0
    %2058 = vmatprep.subr.bf16.mxu0 0
    %2059 = vmatpush1.bf16.msra.mxu0 0
    %2060 = vmatprep.subr.bf16.mxu0 0
    %2061 = vmatpush1.bf16.msra.mxu0 0
    %2062 = vmatprep.subr.bf16.mxu0 0
    %2063 = vmatpush1.bf16.msra.mxu0 0
    %2064 = vmatprep.subr.bf16.mxu0 0
    %2065 = vmatpush1.bf16.msra.mxu0 0
    %2066 = vmatprep.subr.bf16.mxu0 0
    %2067 = vmatpush1.bf16.msra.mxu0 0
    %2068 = vmatprep.subr.bf16.mxu0 0
    %2069 = vmatpush1.bf16.msra.mxu0 0
    %2070 = vmatprep.subr.bf16.mxu0 0
    %2071 = vmatpush1.bf16.msra.mxu0 0
    %2072 = vmatprep.subr.bf16.mxu0 0
    %2073 = vmatpush1.bf16.msra.mxu0 0
    %2074 = vmatprep.subr.bf16.mxu0 0
    %2075 = vmatpush1.bf16.msra.mxu0 0
    %2076 = vmatprep.subr.bf16.mxu0 0
    %2077 = vmatpush1.bf16.msra.mxu0 0
    %2078 = vmatprep.subr.bf16.mxu0 0
    %2079 = vmatpush1.bf16.msra.mxu0 0
    %2080 = vmatprep.subr.bf16.mxu0 0
    %2081 = vmatpush1.bf16.msra.mxu0 0
    %2082 = vmatprep.mubr.bf16.mxu0 0
    %2083 = vmatmul.mubr.bf16.gmra.mrb[0].mxu0 %v2036
    %v2084 = vpop.f32.mrb[0].mxu0
    %v2085 = vadd.f32 0.0, %v2084
    %v2086 = vpop.f32.mrb[0].mxu0
    %v2087 = vpop.f32.mrb[0].mxu0
    %v2088 = vadd.f32 0.0, %v2087
    %v2089 = vpop.f32.mrb[0].mxu0
    %2090 = vmatprep.mubr.bf16.mxu0 0
    %2091 = vmatmul.mubr.bf16.gmra.mrb[0].mxu0 %v2039
    %v2092 = vpop.f32.mrb[0].mxu0
    %v2093 = vadd.f32 0.0, %v2092
    %v2094 = vpop.f32.mrb[0].mxu0
    %v2095 = vpop.f32.mrb[0].mxu0
    %v2096 = vadd.f32 0.0, %v2095
    %v2097 = vpop.f32.mrb[0].mxu0
    %2098 = vmatprep.mubr.bf16.mxu0 0
    %2099 = vmatmul.mubr.bf16.gmra.mrb[0].mxu0 %v2042
    %v2100 = vpop.f32.mrb[0].mxu0
    %v2101 = vadd.f32 0.0, %v2100
    %v2102 = vpop.f32.mrb[0].mxu0
    %v2103 = vpop.f32.mrb[0].mxu0
    %v2104 = vadd.f32 0.0, %v2103
    %v2105 = vpop.f32.mrb[0].mxu0
    %2106 = vmatprep.mubr.bf16.mxu0 0
    %2107 = vmatmul.mubr.bf16.gmra.mrb[0].mxu0 %v2045
    %v2108 = vpop.f32.mrb[0].mxu0
    %v2109 = vadd.f32 0.0, %v2108
    %v2110 = vpop.f32.mrb[0].mxu0
    %v2111 = vpop.f32.mrb[0].mxu0
    %v2112 = vadd.f32 0.0, %v2111
    %v2113 = vpop.f32.mrb[0].mxu0
    %2114 = vdwg.mxu0
    %v2115 = vpack.c.bf16 %v2088, %v2085
    %v2116 = vpack.c.bf16 %v2096, %v2093
    %v2117 = vpack.c.bf16 %v2104, %v2101
    %v2118 = vpack.c.bf16 %v2112, %v2109
    %vm2119 = vcmask 519168
    %2120 = vst.msk [vmem:[#allocation5] sm:$0xf] %vm2119, %v2115
    %v2122 = vunpack.c.h.b16 %v2115
    %v2123 = vpack.c.b16 %v2122, %v2122
    %2124 = vrot.lane.b32.xlu0 %v2123, 64
    %v2125 = vpop.permute.xlu0 %2124
    %vm2127 = vcmask 1043968
    %2128 = vst.msk [vmem:[#allocation5] sm:$0xf] %vm2127, %v2125
    %2129 = vst.msk [vmem:[#allocation5 + $0x4] sm:$0xf] %vm2119, %v2116
    %v2131 = vunpack.c.h.b16 %v2116
    %v2132 = vpack.c.b16 %v2131, %v2131
    %2133 = vrot.lane.b32.xlu0 %v2132, 64
    %v2134 = vpop.permute.xlu0 %2133
    %2136 = vst.msk [vmem:[#allocation5 + $0x4] sm:$0xf] %vm2127, %v2134
    %2137 = vst.msk [vmem:[#allocation5 + $0x8] sm:$0xf] %vm2119, %v2117
    %v2139 = vunpack.c.h.b16 %v2117
    %v2140 = vpack.c.b16 %v2139, %v2139
    %2141 = vrot.lane.b32.xlu0 %v2140, 64
    %v2142 = vpop.permute.xlu0 %2141
    %2144 = vst.msk [vmem:[#allocation5 + $0x8] sm:$0xf] %vm2127, %v2142
    %2145 = vst.msk [vmem:[#allocation5 + $0xc] sm:$0xf] %vm2119, %v2118
    %v2147 = vunpack.c.h.b16 %v2118
    %v2148 = vpack.c.b16 %v2147, %v2147
    %2149 = vrot.lane.b32.xlu0 %v2148, 64
    %v2150 = vpop.permute.xlu0 %2149
    %2152 = vst.msk [vmem:[#allocation5 + $0xc] sm:$0xf] %vm2127, %v2150
    %v2153 = vld [vmem:[#allocation5] sm:$0xff]
    %v2154 = vld [vmem:[#allocation5 + $0x8] sm:$0xff]
    %v2157 = vunpack.c.l.b16 %v2153
    %v2158 = vunpack.c.h.b16 %v2153
    %v2159 = vunpack.c.l.b16 %v2154
    %v2160 = vunpack.c.h.b16 %v2154
    %v2161 = vpack.c.b16 %v2157, %v2157
    %v2162 = vpack.c.b16 %v2158, %v2158
    %v2163 = vpack.c.b16 %v2159, %v2159
    %v2164 = vpack.c.b16 %v2160, %v2160
    %2169 = vmatprep.subr.bf16.mxu0 0
    %2170 = vmatpush1.bf16.msra.mxu0 %v2002
    %2171 = vmatprep.subr.bf16.mxu0 0
    %2172 = vmatpush1.bf16.msra.mxu0 %v2003
    %2173 = vmatprep.subr.bf16.mxu0 0
    %2174 = vmatpush1.bf16.msra.mxu0 %v2004
    %2175 = vmatprep.subr.bf16.mxu0 0
    %2176 = vmatpush1.bf16.msra.mxu0 %v2005
    %2177 = vmatprep.subr.bf16.mxu0 0
    %2178 = vmatpush1.bf16.msra.mxu0 %v2006
    %2179 = vmatprep.subr.bf16.mxu0 0
    %2180 = vmatpush1.bf16.msra.mxu0 %v2007
    %2181 = vmatprep.subr.bf16.mxu0 0
    %2182 = vmatpush1.bf16.msra.mxu0 %v2008
    %2183 = vmatprep.subr.bf16.mxu0 0
    %2184 = vmatpush1.bf16.msra.mxu0 %v2009
    %2185 = vmatprep.subr.bf16.mxu0 0
    %2186 = vmatpush1.bf16.msra.mxu0 %v2010
    %2187 = vmatprep.subr.bf16.mxu0 0
    %2188 = vmatpush1.bf16.msra.mxu0 %v2011
    %2189 = vmatprep.subr.bf16.mxu0 0
    %2190 = vmatpush1.bf16.msra.mxu0 %v2012
    %2191 = vmatprep.subr.bf16.mxu0 0
    %2192 = vmatpush1.bf16.msra.mxu0 %v2013
    %2193 = vmatprep.subr.bf16.mxu0 0
    %2194 = vmatpush1.bf16.msra.mxu0 %v2014
    %2195 = vmatprep.subr.bf16.mxu0 0
    %2196 = vmatpush1.bf16.msra.mxu0 %v2015
    %2197 = vmatprep.subr.bf16.mxu0 0
    %2198 = vmatpush1.bf16.msra.mxu0 %v2016
    %2199 = vmatprep.subr.bf16.mxu0 0
    %2200 = vmatpush1.bf16.msra.mxu0 %v2017
    %2201 = vmatprep.mubr.bf16.mxu0 %v2162
    %2202 = vmatmul.mubr.bf16.gmra.mrb[0].mxu0 %v2161
    %v2203 = vpop.f32.mrb[0].mxu0
    %v2204 = vadd.f32 0.0, %v2203
    %v2205 = vpop.f32.mrb[0].mxu0
    %v2206 = vpop.f32.mrb[0].mxu0
    %v2207 = vpop.f32.mrb[0].mxu0
    %2208 = vdwg.mxu0
    %2209 = vmatprep.subr.bf16.mxu0 0
    %2210 = vmatpush1.bf16.msra.mxu0 %v2018
    %2211 = vmatprep.subr.bf16.mxu0 0
    %2212 = vmatpush1.bf16.msra.mxu0 %v2019
    %2213 = vmatprep.subr.bf16.mxu0 0
    %2214 = vmatpush1.bf16.msra.mxu0 %v2020
    %2215 = vmatprep.subr.bf16.mxu0 0
    %2216 = vmatpush1.bf16.msra.mxu0 %v2021
    %2217 = vmatprep.subr.bf16.mxu0 0
    %2218 = vmatpush1.bf16.msra.mxu0 %v2022
    %2219 = vmatprep.subr.bf16.mxu0 0
    %2220 = vmatpush1.bf16.msra.mxu0 %v2023
    %2221 = vmatprep.subr.bf16.mxu0 0
    %2222 = vmatpush1.bf16.msra.mxu0 %v2024
    %2223 = vmatprep.subr.bf16.mxu0 0
    %2224 = vmatpush1.bf16.msra.mxu0 %v2025
    %2225 = vmatprep.subr.bf16.mxu0 0
    %2226 = vmatpush1.bf16.msra.mxu0 %v2026
    %2227 = vmatprep.subr.bf16.mxu0 0
    %2228 = vmatpush1.bf16.msra.mxu0 %v2027
    %2229 = vmatprep.subr.bf16.mxu0 0
    %2230 = vmatpush1.bf16.msra.mxu0 %v2028
    %2231 = vmatprep.subr.bf16.mxu0 0
    %2232 = vmatpush1.bf16.msra.mxu0 %v2029
    %2233 = vmatprep.subr.bf16.mxu0 0
    %2234 = vmatpush1.bf16.msra.mxu0 %v2030
    %2235 = vmatprep.subr.bf16.mxu0 0
    %2236 = vmatpush1.bf16.msra.mxu0 %v2031
    %2237 = vmatprep.subr.bf16.mxu0 0
    %2238 = vmatpush1.bf16.msra.mxu0 %v2032
    %2239 = vmatprep.subr.bf16.mxu0 0
    %2240 = vmatpush1.bf16.msra.mxu0 %v2033
    %2241 = vmatprep.mubr.bf16.mxu0 %v2164
    %2242 = vmatmul.mubr.bf16.gmra.mrb[0].mxu0 %v2163
    %v2243 = vpop.f32.mrb[0].mxu0
    %v2244 = vadd.f32 %v2204, %v2243
    %v2245 = vpop.f32.mrb[0].mxu0
    %v2246 = vpop.f32.mrb[0].mxu0
    %v2247 = vpop.f32.mrb[0].mxu0
    %2248 = vdwg.mxu0
    %v2249 = vrot.slane %v2244, 4
    %v2250 = vadd.f32 %v2244, %v2249
    %v2251 = vrot.slane %v2250, 2
    %v2252 = vadd.f32 %v2250, %v2251
    %v2253 = vrot.slane %v2252, 1
    %v2254 = vadd.f32 %v2252, %v2253
    %v2255 = vmul.f32 %v2244, %v2244
    %v2256 = vrot.slane %v2255, 4
    %v2257 = vadd.f32 %v2255, %v2256
    %v2258 = vrot.slane %v2257, 2
    %v2259 = vadd.f32 %v2257, %v2258
    %v2260 = vrot.slane %v2259, 1
    %v2261 = vadd.f32 %v2259, %v2260
    %v2262 = vmul.f32 %v2254, 0.125
    %v2263 = vmul.f32 %v2261, 0.125
    %v2264 = vmul.f32 %v2262, %v2262
    %v2265 = vsub.f32 %v2263, %v2264
    %v2266 = vmax.f32 %v2265, 0.0
    %v2267 = vsub.f32 %v2244, %v2262
    %v2268 = vadd.f32 %v2266, 1e-05
    %v2269 = vrsqrt.pop %v2268
    %v2270 = vmul.f32 %v2267, %v2269
    %v2271 = vlaneseq
    %v2272 = vshrl.u32 %v2271, 7
    %v2273 = vsub.s32 0, %v2272
    %v2274 = vrot.slane %v265, %v2273
    %v2275 = vmul.f32 %v2270, %v2274
    %v2276 = vlaneseq
    %v2277 = vshrl.u32 %v2276, 7
    %v2278 = vsub.s32 0, %v2277
    %v2279 = vrot.slane %v266, %v2278
    %v2280 = vadd.f32 %v2275, %v2279
    %vm2281 = vcmp.ge.f32.partialorder %v2280, 0.0
    %v2282 = vmul.f32 %v2280, 0.2
    %v2283 = vsel %vm2281, %v2280, %v2282
    %v2284 = vpack.c.bf16 %v2283, %v2283
    %v2285 = vld [vmem:[#allocation2 + $0x20] sm:$0xff]
    %v2286 = vld [vmem:[#allocation2 + $0x28] sm:$0xff]
    %v2287 = vld [vmem:[#allocation3 + $0x100] sm:$0xff]
    %v2288 = vld [vmem:[#allocation3 + $0x108] sm:$0xff]
    %v2289 = vld [vmem:[#allocation3 + $0x110] sm:$0xff]
    %v2290 = vld [vmem:[#allocation3 + $0x118] sm:$0xff]
    %v2291 = vld [vmem:[#allocation3 + $0x120] sm:$0xff]
    %v2292 = vld [vmem:[#allocation3 + $0x128] sm:$0xff]
    %v2293 = vld [vmem:[#allocation3 + $0x130] sm:$0xff]
    %v2294 = vld [vmem:[#allocation3 + $0x138] sm:$0xff]
    %v2295 = vld [vmem:[#allocation3 + $0x140] sm:$0xff]
    %v2296 = vld [vmem:[#allocation3 + $0x148] sm:$0xff]
    %v2297 = vld [vmem:[#allocation3 + $0x150] sm:$0xff]
    %v2298 = vld [vmem:[#allocation3 + $0x158] sm:$0xff]
    %v2299 = vld [vmem:[#allocation3 + $0x160] sm:$0xff]
    %v2300 = vld [vmem:[#allocation3 + $0x168] sm:$0xff]
    %v2301 = vld [vmem:[#allocation3 + $0x170] sm:$0xff]
    %v2302 = vld [vmem:[#allocation3 + $0x178] sm:$0xff]
    %v2303 = vld [vmem:[#allocation3 + $0x180] sm:$0xff]
    %v2304 = vld [vmem:[#allocation3 + $0x188] sm:$0xff]
    %v2305 = vld [vmem:[#allocation3 + $0x190] sm:$0xff]
    %v2306 = vld [vmem:[#allocation3 + $0x198] sm:$0xff]
    %v2307 = vld [vmem:[#allocation3 + $0x1a0] sm:$0xff]
    %v2308 = vld [vmem:[#allocation3 + $0x1a8] sm:$0xff]
    %v2309 = vld [vmem:[#allocation3 + $0x1b0] sm:$0xff]
    %v2310 = vld [vmem:[#allocation3 + $0x1b8] sm:$0xff]
    %v2311 = vld [vmem:[#allocation3 + $0x1c0] sm:$0xff]
    %v2312 = vld [vmem:[#allocation3 + $0x1c8] sm:$0xff]
    %v2313 = vld [vmem:[#allocation3 + $0x1d0] sm:$0xff]
    %v2314 = vld [vmem:[#allocation3 + $0x1d8] sm:$0xff]
    %v2315 = vld [vmem:[#allocation3 + $0x1e0] sm:$0xff]
    %v2316 = vld [vmem:[#allocation3 + $0x1e8] sm:$0xff]
    %v2317 = vld [vmem:[#allocation3 + $0x1f0] sm:$0xff]
    %v2318 = vld [vmem:[#allocation3 + $0x1f8] sm:$0xff]
    %v2320 = vsel %vm377, %v2285, 0
    %v2323 = vsel %vm377, %v2286, 0
    %v2326 = vsel %vm426, %v2284, 0
    %2328 = vmatprep.subr.bf16.mxu0 0
    %2329 = vmatpush1.bf16.msra.mxu0 %v2326
    %2330 = vmatprep.subr.bf16.mxu0 0
    %2331 = vmatpush1.bf16.msra.mxu0 0
    %2332 = vmatprep.subr.bf16.mxu0 0
    %2333 = vmatpush1.bf16.msra.mxu0 0
    %2334 = vmatprep.subr.bf16.mxu0 0
    %2335 = vmatpush1.bf16.msra.mxu0 0
    %2336 = vmatprep.subr.bf16.mxu0 0
    %2337 = vmatpush1.bf16.msra.mxu0 0
    %2338 = vmatprep.subr.bf16.mxu0 0
    %2339 = vmatpush1.bf16.msra.mxu0 0
    %2340 = vmatprep.subr.bf16.mxu0 0
    %2341 = vmatpush1.bf16.msra.mxu0 0
    %2342 = vmatprep.subr.bf16.mxu0 0
    %2343 = vmatpush1.bf16.msra.mxu0 0
    %2344 = vmatprep.subr.bf16.mxu0 0
    %2345 = vmatpush1.bf16.msra.mxu0 0
    %2346 = vmatprep.subr.bf16.mxu0 0
    %2347 = vmatpush1.bf16.msra.mxu0 0
    %2348 = vmatprep.subr.bf16.mxu0 0
    %2349 = vmatpush1.bf16.msra.mxu0 0
    %2350 = vmatprep.subr.bf16.mxu0 0
    %2351 = vmatpush1.bf16.msra.mxu0 0
    %2352 = vmatprep.subr.bf16.mxu0 0
    %2353 = vmatpush1.bf16.msra.mxu0 0
    %2354 = vmatprep.subr.bf16.mxu0 0
    %2355 = vmatpush1.bf16.msra.mxu0 0
    %2356 = vmatprep.subr.bf16.mxu0 0
    %2357 = vmatpush1.bf16.msra.mxu0 0
    %2358 = vmatprep.subr.bf16.mxu0 0
    %2359 = vmatpush1.bf16.msra.mxu0 0
    %2360 = vmatprep.mubr.bf16.mxu0 0
    %2361 = vmatmul.mubr.bf16.gmra.mrb[0].mxu0 %v2320
    %v2362 = vpop.f32.mrb[0].mxu0
    %v2363 = vadd.f32 0.0, %v2362
    %v2364 = vpop.f32.mrb[0].mxu0
    %v2365 = vpop.f32.mrb[0].mxu0
    %v2366 = vadd.f32 0.0, %v2365
    %v2367 = vpop.f32.mrb[0].mxu0
    %2368 = vmatprep.mubr.bf16.mxu0 0
    %2369 = vmatmul.mubr.bf16.gmra.mrb[0].mxu0 %v2323
    %v2370 = vpop.f32.mrb[0].mxu0
    %v2371 = vadd.f32 0.0, %v2370
    %v2372 = vpop.f32.mrb[0].mxu0
    %v2373 = vpop.f32.mrb[0].mxu0
    %v2374 = vadd.f32 0.0, %v2373
    %v2375 = vpop.f32.mrb[0].mxu0
    %2376 = vdwg.mxu0
    %v2377 = vpack.c.bf16 %v2366, %v2363
    %v2378 = vpack.c.bf16 %v2374, %v2371
    %2379 = vst [vmem:[#allocation6] sm:$0xf] %v2377
    %v2381 = vunpack.c.h.b16 %v2377
    %v2382 = vpack.c.b16 %v2381, %v2381
    %2384 = vst [vmem:[#allocation6 + $0x4] sm:$0xf] %v2382
    %2385 = vst [vmem:[#allocation6 + $0x8] sm:$0xf] %v2378
    %v2387 = vunpack.c.h.b16 %v2378
    %v2388 = vpack.c.b16 %v2387, %v2387
    %2390 = vst [vmem:[#allocation6 + $0xc] sm:$0xf] %v2388
    %v2391 = vld [vmem:[#allocation6] sm:$0xff]
    %v2392 = vld [vmem:[#allocation6 + $0x8] sm:$0xff]
    %v2395 = vunpack.c.l.b16 %v2391
    %v2396 = vunpack.c.h.b16 %v2391
    %v2397 = vunpack.c.l.b16 %v2392
    %v2398 = vunpack.c.h.b16 %v2392
    %v2399 = vpack.c.b16 %v2395, %v2395
    %v2400 = vpack.c.b16 %v2396, %v2396
    %v2401 = vpack.c.b16 %v2397, %v2397
    %v2402 = vpack.c.b16 %v2398, %v2398
    %2407 = vmatprep.subr.bf16.mxu0 0
    %2408 = vmatpush1.bf16.msra.mxu0 %v2287
    %2409 = vmatprep.subr.bf16.mxu0 0
    %2410 = vmatpush1.bf16.msra.mxu0 %v2288
    %2411 = vmatprep.subr.bf16.mxu0 0
    %2412 = vmatpush1.bf16.msra.mxu0 %v2289
    %2413 = vmatprep.subr.bf16.mxu0 0
    %2414 = vmatpush1.bf16.msra.mxu0 %v2290
    %2415 = vmatprep.subr.bf16.mxu0 0
    %2416 = vmatpush1.bf16.msra.mxu0 %v2291
    %2417 = vmatprep.subr.bf16.mxu0 0
    %2418 = vmatpush1.bf16.msra.mxu0 %v2292
    %2419 = vmatprep.subr.bf16.mxu0 0
    %2420 = vmatpush1.bf16.msra.mxu0 %v2293
    %2421 = vmatprep.subr.bf16.mxu0 0
    %2422 = vmatpush1.bf16.msra.mxu0 %v2294
    %2423 = vmatprep.subr.bf16.mxu0 0
    %2424 = vmatpush1.bf16.msra.mxu0 %v2295
    %2425 = vmatprep.subr.bf16.mxu0 0
    %2426 = vmatpush1.bf16.msra.mxu0 %v2296
    %2427 = vmatprep.subr.bf16.mxu0 0
    %2428 = vmatpush1.bf16.msra.mxu0 %v2297
    %2429 = vmatprep.subr.bf16.mxu0 0
    %2430 = vmatpush1.bf16.msra.mxu0 %v2298
    %2431 = vmatprep.subr.bf16.mxu0 0
    %2432 = vmatpush1.bf16.msra.mxu0 %v2299
    %2433 = vmatprep.subr.bf16.mxu0 0
    %2434 = vmatpush1.bf16.msra.mxu0 %v2300
    %2435 = vmatprep.subr.bf16.mxu0 0
    %2436 = vmatpush1.bf16.msra.mxu0 %v2301
    %2437 = vmatprep.subr.bf16.mxu0 0
    %2438 = vmatpush1.bf16.msra.mxu0 %v2302
    %2439 = vmatprep.mubr.bf16.mxu0 %v2400
    %2440 = vmatmul.mubr.bf16.gmra.mrb[0].mxu0 %v2399
    %v2441 = vpop.f32.mrb[0].mxu0
    %v2442 = vadd.f32 0.0, %v2441
    %v2443 = vpop.f32.mrb[0].mxu0
    %v2444 = vpop.f32.mrb[0].mxu0
    %v2445 = vpop.f32.mrb[0].mxu0
    %2446 = vdwg.mxu0
    %2447 = vmatprep.subr.bf16.mxu0 0
    %2448 = vmatpush1.bf16.msra.mxu0 %v2303
    %2449 = vmatprep.subr.bf16.mxu0 0
    %2450 = vmatpush1.bf16.msra.mxu0 %v2304
    %2451 = vmatprep.subr.bf16.mxu0 0
    %2452 = vmatpush1.bf16.msra.mxu0 %v2305
    %2453 = vmatprep.subr.bf16.mxu0 0
    %2454 = vmatpush1.bf16.msra.mxu0 %v2306
    %2455 = vmatprep.subr.bf16.mxu0 0
    %2456 = vmatpush1.bf16.msra.mxu0 %v2307
    %2457 = vmatprep.subr.bf16.mxu0 0
    %2458 = vmatpush1.bf16.msra.mxu0 %v2308
    %2459 = vmatprep.subr.bf16.mxu0 0
    %2460 = vmatpush1.bf16.msra.mxu0 %v2309
    %2461 = vmatprep.subr.bf16.mxu0 0
    %2462 = vmatpush1.bf16.msra.mxu0 %v2310
    %2463 = vmatprep.subr.bf16.mxu0 0
    %2464 = vmatpush1.bf16.msra.mxu0 %v2311
    %2465 = vmatprep.subr.bf16.mxu0 0
    %2466 = vmatpush1.bf16.msra.mxu0 %v2312
    %2467 = vmatprep.subr.bf16.mxu0 0
    %2468 = vmatpush1.bf16.msra.mxu0 %v2313
    %2469 = vmatprep.subr.bf16.mxu0 0
    %2470 = vmatpush1.bf16.msra.mxu0 %v2314
    %2471 = vmatprep.subr.bf16.mxu0 0
    %2472 = vmatpush1.bf16.msra.mxu0 %v2315
    %2473 = vmatprep.subr.bf16.mxu0 0
    %2474 = vmatpush1.bf16.msra.mxu0 %v2316
    %2475 = vmatprep.subr.bf16.mxu0 0
    %2476 = vmatpush1.bf16.msra.mxu0 %v2317
    %2477 = vmatprep.subr.bf16.mxu0 0
    %2478 = vmatpush1.bf16.msra.mxu0 %v2318
    %2479 = vmatprep.mubr.bf16.mxu0 %v2402
    %2480 = vmatmul.mubr.bf16.gmra.mrb[0].mxu0 %v2401
    %v2481 = vpop.f32.mrb[0].mxu0
    %v2482 = vadd.f32 %v2442, %v2481
    %v2483 = vpop.f32.mrb[0].mxu0
    %v2484 = vpop.f32.mrb[0].mxu0
    %v2485 = vpop.f32.mrb[0].mxu0
    %2486 = vdwg.mxu0
    %v2487 = vlaneseq
    %v2488 = vshrl.u32 %v2487, 7
    %v2489 = vsub.s32 0, %v2488
    %v2490 = vrot.slane %v267, %v2489
    %v2491 = vadd.f32 %v2482, %v2490
    %vm2492 = vcmask 517120
    %2493 = vst.msk [vmem:[#allocation11] sm:$0x3] %vm2492, %v2491
    %v2494 = vmul.f32 %v2491, 1.442695
    %v2495 = vpow.pop %v2494
    %2497 = vrot.lane.b32.xlu0 %v2495, 64
    %v2498 = vpop.permute.xlu0 %2497
    %2500 = vst.msk [vmem:[#allocation12] sm:$0x3] %vm2492, %v2498
    // Predicated region
    $region90: #{encoder_x_forward.1} parent=1 // pred_check
      _
    $region91: #{encoder_x_forward.1} parent=1 // pred_check_branch
      %2502 = sbr.rel (0) target = $region93
    $region92: #{encoder_x_forward.1} parent=1 // pred_region
      %s2504 = ssub.s32 32, 32
      %2505 = vsyncadd [#allocation10], %s2504
      %s2507 = sshll.u32 [#allocation11], 4
      %s2508 = int_to_ptr.vmem [resolvable:$true] %s2507
      %2510 = dma.vmem_to_hbm [thread:$0]  %s2508, 32, %s6, [#allocation10]
    $region93: #{encoder_x_forward.1} parent=1 // pred_fallthru
      _
    // Predicated region
    $region94: #{encoder_x_forward.1} parent=1 // pred_check
      _
    $region95: #{encoder_x_forward.1} parent=1 // pred_check_branch
      %2512 = sbr.rel (0) target = $region97
    $region96: #{encoder_x_forward.1} parent=1 // pred_region
      %s2514 = ssub.s32 32, 32
      %2515 = vsyncadd [#allocation13], %s2514
      %s2517 = sshll.u32 [#allocation12], 4
      %s2518 = int_to_ptr.vmem [resolvable:$true] %s2517
      %2520 = dma.vmem_to_hbm [thread:$0]  %s2518, 32, %s7, [#allocation13]
    $region97: #{encoder_x_forward.1} parent=1 // pred_fallthru
      _
    // Predicated region
    $region98: #{encoder_x_forward.1} parent=1 // pred_check
      _
    $region99: #{encoder_x_forward.1} parent=1 // pred_check_branch
      %2522 = sbr.rel (0) target = $region101
    $region100: #{encoder_x_forward.1} parent=1 // pred_region
      %2523 = dma.done [#allocation10], 32
    $region101: #{encoder_x_forward.1} parent=1 // pred_fallthru
      _
    // Predicated region
    $region102: #{encoder_x_forward.1} parent=1 // pred_check
      _
    $region103: #{encoder_x_forward.1} parent=1 // pred_check_branch
      %2525 = sbr.rel (0) target = $region105
    $region104: #{encoder_x_forward.1} parent=1 // pred_region
      %2526 = dma.done [#allocation13], 32
    $region105: #{encoder_x_forward.1} parent=1 // pred_fallthru
      _
    %2527 = vsyncpa [#allocation9], 1
    %2528 = vsyncpa [#allocation10], 1
    %2529 = vsyncpa [#allocation13], 1
  %2530 = vsyncmov [#allocation7]
  %s2531 = vpop.sfrf %2530
  %p2532 = scmp.eq.s32.totalorder %s2531, 0
  %p2533 = pneg %p2532
  %2535 = shalt.err (%p2533)
  %s2536 = scalar_lea.sflag [#allocation7], 1
  %2537 = vsyncmov %s2536
  %s2538 = vpop.sfrf %2537
  %p2539 = scmp.eq.s32.totalorder %s2538, 0
  %p2540 = pneg %p2539
  %2542 = shalt.err (%p2540)

</llo_original>
